<compile_context>
chip_gen: v7x
topology: tpu7x:2x2x1
jax: 0.10.0
libtpu: 0.0.40
codegen_flags: <defaults>
</compile_context>

<pallas_src>
import jax
import jax.numpy as jnp
from jax.experimental import pallas as pl
from jax.experimental.pallas import tpu as pltpu


def mlp_kernel(x_ref, w1_ref, b1_ref, w2_ref, b2_ref, w3_ref, b3_ref, o_ref):
    # x tile: (TB, 784) bf16 — already cast in the wrapper (fused with reshape/pad).
    x = x_ref[...]

    h1 = jnp.dot(x, w1_ref[...], preferred_element_type=jnp.float32) + b1_ref[...]
    h1 = jnp.maximum(h1, 0.0)                                  # (TB, 512) f32

    h2 = jnp.dot(h1.astype(jnp.bfloat16), w2_ref[...],
                 preferred_element_type=jnp.float32) + b2_ref[...]
    h2 = jnp.maximum(h2, 0.0)                                  # (TB, 128) f32

    h3 = jnp.dot(h2.astype(jnp.bfloat16), w3_ref[...],
                 preferred_element_type=jnp.float32) + b3_ref[...]
    o_ref[...] = h3.astype(o_ref.dtype)                        # (TB, 128) bf16 lane-dense store


def _round_up(n, m):
    return ((n + m - 1) // m) * m


_MIN_TB = 16  # bf16 sublane-packed vreg holds 16 rows; keep batch tiles multiples of 16.


def mnist_fc_forward(x_nchw, params, *, batch_tile=512):
    """Forward pass. x_nchw: (B, 1, 28, 28) float32. Returns (B, num_classes) float32."""
    w1, b1, w2, b2, w3, b3 = params
    B = x_nchw.shape[0]
    num_classes = w3.shape[1]

    # torch.flatten(start_dim=1) + fused f32->bf16 cast (halves x HBM traffic).
    x = x_nchw.reshape(B, -1).astype(jnp.bfloat16)
    D_in = x.shape[1]                                          # 784

    # ---- pad feature dims to lane multiples (zero padding => identical math) ----
    H1 = _round_up(w1.shape[1], 128)       # 500 -> 512
    H2 = _round_up(w2.shape[1], 128)       # 100 -> 128
    H3 = _round_up(num_classes, 128)       # 10  -> 128

    def pad_w(w, rows, cols):
        wp = jnp.zeros((rows, cols), jnp.bfloat16)
        return wp.at[:w.shape[0], :w.shape[1]].set(w.astype(jnp.bfloat16))

    def pad_b(b, cols):
        bp = jnp.zeros((1, cols), jnp.float32)
        return bp.at[0, :b.shape[0]].set(b.astype(jnp.float32))

    w1p, b1p = pad_w(w1, D_in, H1), pad_b(b1, H1)
    w2p, b2p = pad_w(w2, H1, H2), pad_b(b2, H2)
    w3p, b3p = pad_w(w3, H2, H3), pad_b(b3, H3)

    # ---- batch tiling: grid over batch, weights resident across iterations ----
    batch_tile = _round_up(max(batch_tile, _MIN_TB), _MIN_TB)
    Bp_min = _round_up(B, _MIN_TB)
    if Bp_min <= batch_tile:
        # Whole batch fits in one tile: split into ~2 steps so v7x megacore can
        # shard the batch across both TensorCores (no-op loss on v5e/v6e).
        TB = max(_MIN_TB, _round_up((Bp_min + 1) // 2, _MIN_TB))
    else:
        TB = batch_tile
    Bp = _round_up(B, TB)
    if Bp != B:
        x = jnp.pad(x, ((0, Bp - B), (0, 0)))
    grid = (Bp // TB,)

    resident = lambda a: pl.BlockSpec(a.shape, lambda i: (0, 0))

    out = pl.pallas_call(
        mlp_kernel,
        out_shape=jax.ShapeDtypeStruct((Bp, H3), jnp.bfloat16),
        grid=grid,
        in_specs=[
            pl.BlockSpec((TB, D_in), lambda i: (i, 0)),   # x: tiled over batch (double-buffered)
            resident(w1p), resident(b1p),
            resident(w2p), resident(b2p),
            resident(w3p), resident(b3p),
        ],
        out_specs=pl.BlockSpec((TB, H3), lambda i: (i, 0)),
        compiler_params=pltpu.CompilerParams(
            dimension_semantics=("parallel",),            # shards batch across TCs on v7x
        ),
    )(x, w1p, b1p, w2p, b2p, w3p, b3p)

    return out[:B, :num_classes].astype(jnp.float32)


def init_params(key, num_classes=10):
    """Deterministic init matching nn.Linear shapes (uniform +/- 1/sqrt(fan_in)).
    Weights stored as (in_features, out_features) so y = x @ W + b == PyTorch."""
    dims = [(28 * 28, 500), (500, 100), (100, num_classes)]
    params = []
    for (fan_in, fan_out) in dims:
        key, kw, kb = jax.random.split(key, 3)
        bound = 1.0 / (fan_in ** 0.5)
        w = jax.random.uniform(kw, (fan_in, fan_out), jnp.float32, -bound, bound)
        b = jax.random.uniform(kb, (fan_out,), jnp.float32, -bound, bound)
        params += [w, b]
    return tuple(params)


def reference_forward(x_nchw, params):
    """Pure-JAX reference using the same bf16-operand / f32-accumulate recipe."""
    w1, b1, w2, b2, w3, b3 = params
    x = x_nchw.reshape(x_nchw.shape[0], -1).astype(jnp.float32)

    def lin(h, w, b):
        return jnp.dot(h.astype(jnp.bfloat16), w.astype(jnp.bfloat16),
                       preferred_element_type=jnp.float32) + b

    h1 = jnp.maximum(lin(x, w1, b1), 0.0)
    h2 = jnp.maximum(lin(h1, w2, b2), 0.0)
    return lin(h2, w3, b3)


if __name__ == "__main__":
    key = jax.random.PRNGKey(0)
    key, kx = jax.random.split(key)
    # Small MNIST-shaped batch (NCHW). B=32 -> TB=16, grid=(2,) so the multi-step
    # (megacore-shardable) pipeline path is exercised even at this tiny size.
    x = jax.random.normal(kx, (32, 1, 28, 28), jnp.float32)

    params = init_params(key, num_classes=10)

    out = mnist_fc_forward(x, params)
    out = jax.block_until_ready(out)

    ref = reference_forward(x, params)
    assert out.shape == (32, 10), out.shape
    # Kernel logits pass through a final bf16 store (~0.4% rel error vs f32 ref).
    assert jnp.allclose(out, ref, atol=2e-2, rtol=2e-2), "mismatch vs JAX reference"

    print("KERNEL_OK")
</pallas_src>

<mosaic_0001>
module attributes {stable_mosaic.version = 11 : i64} {
  func.func @mlp_kernel(%arg0: i32, %arg1: memref<16x784xbf16, #tpu.memory_space<vmem>>, %arg2: memref<784x512xbf16, #tpu.memory_space<vmem>>, %arg3: memref<1x512xf32, #tpu.memory_space<vmem>>, %arg4: memref<512x128xbf16, #tpu.memory_space<vmem>>, %arg5: memref<1x128xf32, #tpu.memory_space<vmem>>, %arg6: memref<128x128xbf16, #tpu.memory_space<vmem>>, %arg7: memref<1x128xf32, #tpu.memory_space<vmem>>, %arg8: memref<16x128xbf16, #tpu.memory_space<vmem>>) attributes {dimension_semantics = [#tpu.dimension_semantics<parallel>], iteration_bounds = array<i64: 2>, scalar_prefetch = 0 : i64, scratch_operands = 0 : i64, tpu.core_type = #tpu.core_type<tc>, window_params = [{transform_indices = @transform_0, window_bounds = array<i64: 16, 784>}, {pipeline_mode = #tpu.pipeline_mode<synchronous>, transform_indices = @transform_1, window_bounds = array<i64: 784, 512>}, {pipeline_mode = #tpu.pipeline_mode<synchronous>, transform_indices = @transform_2, window_bounds = array<i64: 1, 512>}, {pipeline_mode = #tpu.pipeline_mode<synchronous>, transform_indices = @transform_3, window_bounds = array<i64: 512, 128>}, {pipeline_mode = #tpu.pipeline_mode<synchronous>, transform_indices = @transform_4, window_bounds = array<i64: 1, 128>}, {pipeline_mode = #tpu.pipeline_mode<synchronous>, transform_indices = @transform_5, window_bounds = array<i64: 128, 128>}, {pipeline_mode = #tpu.pipeline_mode<synchronous>, transform_indices = @transform_6, window_bounds = array<i64: 1, 128>}, {transform_indices = @transform_7, window_bounds = array<i64: 16, 128>}]} {
    %c0 = arith.constant 0 : index
    %c0_0 = arith.constant 0 : index
    %0 = vector.load %arg1[%c0, %c0_0] : memref<16x784xbf16, #tpu.memory_space<vmem>>, vector<16x784xbf16>
    %c0_1 = arith.constant 0 : index
    %c0_2 = arith.constant 0 : index
    %1 = vector.load %arg2[%c0_1, %c0_2] : memref<784x512xbf16, #tpu.memory_space<vmem>>, vector<784x512xbf16>
    %cst = arith.constant dense<0.000000e+00> : vector<16x512xf32>
    %2 = tpu.matmul %0, %1, %cst {dimension_numbers = #tpu.dot_dimension_numbers<[1], [0], [0], [1], [0, 0, 1, 1], [], []>} : vector<16x784xbf16>, vector<784x512xbf16>, vector<16x512xf32> -> vector<16x512xf32>
    %c0_3 = arith.constant 0 : index
    %c0_4 = arith.constant 0 : index
    %3 = vector.load %arg3[%c0_3, %c0_4] : memref<1x512xf32, #tpu.memory_space<vmem>>, vector<1x512xf32>
    %4 = vector.broadcast %3 : vector<1x512xf32> to vector<16x512xf32>
    %5 = arith.addf %2, %4 : vector<16x512xf32>
    %cst_5 = arith.constant 0.000000e+00 : f32
    %6 = vector.broadcast %cst_5 : f32 to vector<16x512xf32>
    %7 = arith.maximumf %5, %6 : vector<16x512xf32>
    %8 = arith.truncf %7 : vector<16x512xf32> to vector<16x512xbf16>
    %c0_6 = arith.constant 0 : index
    %c0_7 = arith.constant 0 : index
    %9 = vector.load %arg4[%c0_6, %c0_7] : memref<512x128xbf16, #tpu.memory_space<vmem>>, vector<512x128xbf16>
    %cst_8 = arith.constant dense<0.000000e+00> : vector<16x128xf32>
    %10 = tpu.matmul %8, %9, %cst_8 {dimension_numbers = #tpu.dot_dimension_numbers<[1], [0], [0], [1], [0, 0, 1, 1], [], []>} : vector<16x512xbf16>, vector<512x128xbf16>, vector<16x128xf32> -> vector<16x128xf32>
    %c0_9 = arith.constant 0 : index
    %c0_10 = arith.constant 0 : index
    %11 = vector.load %arg5[%c0_9, %c0_10] : memref<1x128xf32, #tpu.memory_space<vmem>>, vector<1x128xf32>
    %12 = vector.broadcast %11 : vector<1x128xf32> to vector<16x128xf32>
    %13 = arith.addf %10, %12 : vector<16x128xf32>
    %cst_11 = arith.constant 0.000000e+00 : f32
    %14 = vector.broadcast %cst_11 : f32 to vector<16x128xf32>
    %15 = arith.maximumf %13, %14 : vector<16x128xf32>
    %16 = arith.truncf %15 : vector<16x128xf32> to vector<16x128xbf16>
    %c0_12 = arith.constant 0 : index
    %c0_13 = arith.constant 0 : index
    %17 = vector.load %arg6[%c0_12, %c0_13] : memref<128x128xbf16, #tpu.memory_space<vmem>>, vector<128x128xbf16>
    %cst_14 = arith.constant dense<0.000000e+00> : vector<16x128xf32>
    %18 = tpu.matmul %16, %17, %cst_14 {dimension_numbers = #tpu.dot_dimension_numbers<[1], [0], [0], [1], [0, 0, 1, 1], [], []>} : vector<16x128xbf16>, vector<128x128xbf16>, vector<16x128xf32> -> vector<16x128xf32>
    %c0_15 = arith.constant 0 : index
    %c0_16 = arith.constant 0 : index
    %19 = vector.load %arg7[%c0_15, %c0_16] : memref<1x128xf32, #tpu.memory_space<vmem>>, vector<1x128xf32>
    %20 = vector.broadcast %19 : vector<1x128xf32> to vector<16x128xf32>
    %21 = arith.addf %18, %20 : vector<16x128xf32>
    %22 = arith.truncf %21 : vector<16x128xf32> to vector<16x128xbf16>
    %c0_17 = arith.constant 0 : index
    %c0_18 = arith.constant 0 : index
    %23 = vector.load %arg8[%c0_17, %c0_18] : memref<16x128xbf16, #tpu.memory_space<vmem>>, vector<16x128xbf16>
    tpu.vector_store %arg8[%c0_17, %c0_18], %22 {strides = array<i32>} : memref<16x128xbf16, #tpu.memory_space<vmem>>, vector<16x128xbf16>,
    return
  }
  func.func @transform_0(%arg0: i32) -> (i32, i32) {
    %c0_i32 = arith.constant 0 : i32
    %c0_i32_0 = arith.constant 0 : i32
    return %arg0, %c0_i32 : i32, i32
  }
  func.func @transform_1(%arg0: i32) -> (i32, i32) {
    %c0_i32 = arith.constant 0 : i32
    %c0_i32_0 = arith.constant 0 : i32
    %c0_i32_1 = arith.constant 0 : i32
    return %c0_i32, %c0_i32_0 : i32, i32
  }
  func.func @transform_2(%arg0: i32) -> (i32, i32) {
    %c0_i32 = arith.constant 0 : i32
    %c0_i32_0 = arith.constant 0 : i32
    %c0_i32_1 = arith.constant 0 : i32
    return %c0_i32, %c0_i32_0 : i32, i32
  }
  func.func @transform_3(%arg0: i32) -> (i32, i32) {
    %c0_i32 = arith.constant 0 : i32
    %c0_i32_0 = arith.constant 0 : i32
    %c0_i32_1 = arith.constant 0 : i32
    return %c0_i32, %c0_i32_0 : i32, i32
  }
  func.func @transform_4(%arg0: i32) -> (i32, i32) {
    %c0_i32 = arith.constant 0 : i32
    %c0_i32_0 = arith.constant 0 : i32
    %c0_i32_1 = arith.constant 0 : i32
    return %c0_i32, %c0_i32_0 : i32, i32
  }
  func.func @transform_5(%arg0: i32) -> (i32, i32) {
    %c0_i32 = arith.constant 0 : i32
    %c0_i32_0 = arith.constant 0 : i32
    %c0_i32_1 = arith.constant 0 : i32
    return %c0_i32, %c0_i32_0 : i32, i32
  }
  func.func @transform_6(%arg0: i32) -> (i32, i32) {
    %c0_i32 = arith.constant 0 : i32
    %c0_i32_0 = arith.constant 0 : i32
    %c0_i32_1 = arith.constant 0 : i32
    return %c0_i32, %c0_i32_0 : i32, i32
  }
  func.func @transform_7(%arg0: i32) -> (i32, i32) {
    %c0_i32 = arith.constant 0 : i32
    %c0_i32_0 = arith.constant 0 : i32
    return %arg0, %c0_i32 : i32, i32
  }
}

</mosaic_0001>

<llo_original>
// kernel: tpu_custom_call.1
$region0: #{tpu_custom_call.1}
  #allocation0 [shape = 'u32[]', space=smem, size = 0x4, offset = 0x4, fixed_abs, tag = 'smem constant byte address 0x4 - core index']
  #allocation1 [shape = 'u32[144,128]{1,0:T(1,128)}', space=vmem, size = 0x12000, scoped, tag = 'internal scratch']
  %s0 = inlined_call_operand.hbm [shape: bf16[32,784], index: 0, kind: input, shape index: {}]
  %s1 = inlined_call_operand.hbm [shape: bf16[784,512], index: 1, kind: input, shape index: {}]
  %s2 = inlined_call_operand.vmem [shape: f32[1,512], index: 2, kind: input, shape index: {}]
  %s3 = inlined_call_operand.hbm [shape: bf16[512,128], index: 3, kind: input, shape index: {}]
  %s4 = inlined_call_operand.vmem [shape: f32[1,128], index: 4, kind: input, shape index: {}]
  %s5 = inlined_call_operand.hbm [shape: bf16[128,128], index: 5, kind: input, shape index: {}]
  %s6 = inlined_call_operand.vmem [shape: f32[1,128], index: 6, kind: input, shape index: {}]
  %s7 = inlined_call_operand.hbm [shape: bf16[32,128], index: 7, kind: output, shape index: {}]
  %s8 = sld [smem:[#allocation0]]
  $region77: #{tpu_custom_call.1} parent=0
    _
  %s10 = ssub.s32 1, %s8
  %s11 = scalar_select 0, %s10, %s8
  $region1: #{tpu_custom_call.1} parent=0
    #allocation2 [shape = 'u8[57344]{0}', space=vmem, size = 0xe000, scoped, tag = 'input window, operand 0']
    #allocation3 [shape = 's32[2]{0}', space=sflag, size = 0x8, scoped, tag = 'scoped memory for tpu_custom_call.1']
    #allocation4 [shape = 's32[2]{0}', space=sflag, size = 0x8, scoped, tag = 'scoped memory for tpu_custom_call.1']
    #allocation5 [shape = 'u8[802816]{0}', space=vmem, size = 0xc4000, scoped, tag = 'input window, operand 1, single buffered']
    #allocation6 [shape = 's32[1]{0}', space=sflag, size = 0x4, scoped, tag = 'scoped memory for tpu_custom_call.1']
    #allocation7 [shape = 'u8[131072]{0}', space=vmem, size = 0x20000, scoped, tag = 'input window, operand 3, single buffered']
    #allocation8 [shape = 'u8[32768]{0}', space=vmem, size = 0x8000, scoped, tag = 'input window, operand 5, single buffered']
    #allocation9 [shape = 's32[1]{0}', space=sflag, size = 0x4, scoped, tag = 'scoped memory for tpu_custom_call.1']
    #allocation10 [shape = 'u8[8192]{0}', space=vmem, size = 0x2000, scoped, tag = 'output window, operand 0']
    %12 = vsyncpa [#allocation3], 0
    %s13 = scalar_lea.sflag [#allocation3], 1
    %14 = vsyncpa %s13, 0
    %15 = vsyncpa [#allocation6], 0
    %16 = vsyncpa [#allocation9], 0
    %17 = vsyncpa [#allocation4], 0
    %s18 = scalar_lea.sflag [#allocation4], 1
    %19 = vsyncpa %s18, 0
    loop: start=0, step=1, limit=4
    $region2: #{tpu_custom_call.1} parent=1 // loop_pre_header
      _
    $region3: #{tpu_custom_call.1} parent=1 // loop_header
      %s21 = sphi 0, %s25
      %p22 = scmp.ge.s32.totalorder %s21, 4
      %s31 = sphi 0, %s33
      %s34 = sphi 0, %s31
      %s35 = sphi 0, %s34
      %s51 = sphi 0, %s35
      %s55 = sphi 0, %s55
      %s57 = sphi 0, %s55
      %s58 = sphi 0, %s57
      %s72 = sphi 0, %s58
      %s76 = sphi 0, %s76
      %s78 = sphi 0, %s76
      %s79 = sphi 0, %s78
      %s93 = sphi 0, %s79
      %s97 = sphi 0, %s97
      %s99 = sphi 0, %s97
      %s100 = sphi 0, %s99
      %s114 = sphi 0, %s100
      %s118 = sphi 0, %s118
      %s120 = sphi 0, %s118
      %s121 = sphi 0, %s120
      %s135 = sphi 0, %s121
      %s139 = sphi 0, %s139
      %s141 = sphi 0, %s139
      %s142 = sphi 0, %s141
      %s156 = sphi 0, %s142
      %s160 = sphi 0, %s160
      %s162 = sphi 0, %s160
      %s163 = sphi 0, %s162
      %s177 = sphi 0, %s163
      %s183 = sphi 0, %s185
      %s186 = sphi 0, %s183
      %s187 = sphi 0, %s186
      %s203 = sphi 0, %s187
    $region4: #{tpu_custom_call.1} parent=1 // loop_header_branch
      %24 = sbr.rel (%p22) target = $region8
    $region5: #{tpu_custom_call.1} parent=1 // loop_body
      %s26 = ssub.s32 %s21, 1
      %s27 = ssub.s32 %s21, 2
      %s28 = sadd.s32 %s21, 1
      %s29 = ssub.s32 %s21, %s28
      %p30 = scmp.eq.s32.totalorder %s29, 0
      %s32 = sadd.s32 %s31, 1
      %s33 = scalar_select %p30, %s31, %s32
      %p36 = pneg %p30
      %p37 = scmp.eq.s32.totalorder %s21, 1
      %p38 = por %p36, %p37
      %p39 = scmp.ne.s32.totalorder %s31, %s34
      %p40 = scmp.eq.s32.totalorder %s21, 0
      %p41 = por %p39, %p40
      %p42 = scmp.ne.s32.totalorder %s31, %s34
      %p43 = scmp.eq.s32.totalorder %s26, 1
      %p44 = por %p42, %p43
      %p45 = scmp.ne.s32.totalorder %s34, %s35
      %p46 = scmp.eq.s32.totalorder %s26, 0
      %p47 = por %p45, %p46
      %p48 = scmp.ne.s32.totalorder %s34, %s35
      %p49 = scmp.eq.s32.totalorder %s27, 1
      %p50 = por %p48, %p49
      %p52 = scmp.ne.s32.totalorder %s35, %s51
      %p53 = scmp.eq.s32.totalorder %s27, 0
      %p54 = por %p52, %p53
      %s56 = sadd.s32 %s55, 1
      %p59 = scmp.eq.s32.totalorder %s21, 1
      %p60 = scmp.ne.s32.totalorder %s55, %s57
      %p61 = scmp.eq.s32.totalorder %s21, 0
      %p62 = por %p60, %p61
      %p63 = scmp.ne.s32.totalorder %s55, %s57
      %p64 = scmp.eq.s32.totalorder %s26, 1
      %p65 = por %p63, %p64
      %p66 = scmp.ne.s32.totalorder %s57, %s58
      %p67 = scmp.eq.s32.totalorder %s26, 0
      %p68 = por %p66, %p67
      %p69 = scmp.ne.s32.totalorder %s57, %s58
      %p70 = scmp.eq.s32.totalorder %s27, 1
      %p71 = por %p69, %p70
      %p73 = scmp.ne.s32.totalorder %s58, %s72
      %p74 = scmp.eq.s32.totalorder %s27, 0
      %p75 = por %p73, %p74
      %s77 = sadd.s32 %s76, 1
      %p80 = scmp.eq.s32.totalorder %s21, 1
      %p81 = scmp.ne.s32.totalorder %s76, %s78
      %p82 = scmp.eq.s32.totalorder %s21, 0
      %p83 = por %p81, %p82
      %p84 = scmp.ne.s32.totalorder %s76, %s78
      %p85 = scmp.eq.s32.totalorder %s26, 1
      %p86 = por %p84, %p85
      %p87 = scmp.ne.s32.totalorder %s78, %s79
      %p88 = scmp.eq.s32.totalorder %s26, 0
      %p89 = por %p87, %p88
      %p90 = scmp.ne.s32.totalorder %s78, %s79
      %p91 = scmp.eq.s32.totalorder %s27, 1
      %p92 = por %p90, %p91
      %p94 = scmp.ne.s32.totalorder %s79, %s93
      %p95 = scmp.eq.s32.totalorder %s27, 0
      %p96 = por %p94, %p95
      %s98 = sadd.s32 %s97, 1
      %p101 = scmp.eq.s32.totalorder %s21, 1
      %p102 = scmp.ne.s32.totalorder %s97, %s99
      %p103 = scmp.eq.s32.totalorder %s21, 0
      %p104 = por %p102, %p103
      %p105 = scmp.ne.s32.totalorder %s97, %s99
      %p106 = scmp.eq.s32.totalorder %s26, 1
      %p107 = por %p105, %p106
      %p108 = scmp.ne.s32.totalorder %s99, %s100
      %p109 = scmp.eq.s32.totalorder %s26, 0
      %p110 = por %p108, %p109
      %p111 = scmp.ne.s32.totalorder %s99, %s100
      %p112 = scmp.eq.s32.totalorder %s27, 1
      %p113 = por %p111, %p112
      %p115 = scmp.ne.s32.totalorder %s100, %s114
      %p116 = scmp.eq.s32.totalorder %s27, 0
      %p117 = por %p115, %p116
      %s119 = sadd.s32 %s118, 1
      %p122 = scmp.eq.s32.totalorder %s21, 1
      %p123 = scmp.ne.s32.totalorder %s118, %s120
      %p124 = scmp.eq.s32.totalorder %s21, 0
      %p125 = por %p123, %p124
      %p126 = scmp.ne.s32.totalorder %s118, %s120
      %p127 = scmp.eq.s32.totalorder %s26, 1
      %p128 = por %p126, %p127
      %p129 = scmp.ne.s32.totalorder %s120, %s121
      %p130 = scmp.eq.s32.totalorder %s26, 0
      %p131 = por %p129, %p130
      %p132 = scmp.ne.s32.totalorder %s120, %s121
      %p133 = scmp.eq.s32.totalorder %s27, 1
      %p134 = por %p132, %p133
      %p136 = scmp.ne.s32.totalorder %s121, %s135
      %p137 = scmp.eq.s32.totalorder %s27, 0
      %p138 = por %p136, %p137
      %s140 = sadd.s32 %s139, 1
      %p143 = scmp.eq.s32.totalorder %s21, 1
      %p144 = scmp.ne.s32.totalorder %s139, %s141
      %p145 = scmp.eq.s32.totalorder %s21, 0
      %p146 = por %p144, %p145
      %p147 = scmp.ne.s32.totalorder %s139, %s141
      %p148 = scmp.eq.s32.totalorder %s26, 1
      %p149 = por %p147, %p148
      %p150 = scmp.ne.s32.totalorder %s141, %s142
      %p151 = scmp.eq.s32.totalorder %s26, 0
      %p152 = por %p150, %p151
      %p153 = scmp.ne.s32.totalorder %s141, %s142
      %p154 = scmp.eq.s32.totalorder %s27, 1
      %p155 = por %p153, %p154
      %p157 = scmp.ne.s32.totalorder %s142, %s156
      %p158 = scmp.eq.s32.totalorder %s27, 0
      %p159 = por %p157, %p158
      %s161 = sadd.s32 %s160, 1
      %p164 = scmp.eq.s32.totalorder %s21, 1
      %p165 = scmp.ne.s32.totalorder %s160, %s162
      %p166 = scmp.eq.s32.totalorder %s21, 0
      %p167 = por %p165, %p166
      %p168 = scmp.ne.s32.totalorder %s160, %s162
      %p169 = scmp.eq.s32.totalorder %s26, 1
      %p170 = por %p168, %p169
      %p171 = scmp.ne.s32.totalorder %s162, %s163
      %p172 = scmp.eq.s32.totalorder %s26, 0
      %p173 = por %p171, %p172
      %p174 = scmp.ne.s32.totalorder %s162, %s163
      %p175 = scmp.eq.s32.totalorder %s27, 1
      %p176 = por %p174, %p175
      %p178 = scmp.ne.s32.totalorder %s163, %s177
      %p179 = scmp.eq.s32.totalorder %s27, 0
      %p180 = por %p178, %p179
      %s181 = ssub.s32 %s21, %s28
      %p182 = scmp.eq.s32.totalorder %s181, 0
      %s184 = sadd.s32 %s183, 1
      %s185 = scalar_select %p182, %s183, %s184
      %p188 = pneg %p182
      %p189 = scmp.eq.s32.totalorder %s21, 1
      %p190 = por %p188, %p189
      %p191 = scmp.ne.s32.totalorder %s183, %s186
      %p192 = scmp.eq.s32.totalorder %s21, 0
      %p193 = por %p191, %p192
      %p194 = scmp.ne.s32.totalorder %s183, %s186
      %p195 = scmp.eq.s32.totalorder %s26, 1
      %p196 = por %p194, %p195
      %p197 = scmp.ne.s32.totalorder %s186, %s187
      %p198 = scmp.eq.s32.totalorder %s26, 0
      %p199 = por %p197, %p198
      %p200 = scmp.ne.s32.totalorder %s186, %s187
      %p201 = scmp.eq.s32.totalorder %s27, 1
      %p202 = por %p200, %p201
      %p204 = scmp.ne.s32.totalorder %s187, %s203
      %p205 = scmp.eq.s32.totalorder %s27, 0
      %p206 = por %p204, %p205
      %p207 = scmp.le.s32.totalorder 1, %s21
      %p208 = scmp.lt.s32.totalorder %s21, 3
      %p209 = pnand %p207, %p208
      %p210 = pneg %p209
      // Predicated region
      $region9: #{tpu_custom_call.1} parent=5 // pred_check
        _
      $region10: #{tpu_custom_call.1} parent=5 // pred_check_branch
        %212 = sbr.rel (%p209) target = $region12
      $region11: #{tpu_custom_call.1} parent=5 // pred_region
        %s213 = ssub.s32 %s21, 1
        // Predicated region
        $region13: #{tpu_custom_call.1} parent=11 // pred_check
          %p214 = pneg %p68
        $region14: #{tpu_custom_call.1} parent=11 // pred_check_branch
          %216 = sbr.rel (%p214) target = $region16
        $region15: #{tpu_custom_call.1} parent=11 // pred_region
          %s218 = ssub.s32 25088, 25088
          %219 = vsyncadd [#allocation6], %s218
          %s220 = sshll.u32 [#allocation5], 4
          %s221 = int_to_ptr.vmem [resolvable:$true] %s220
          %226 = dma.hbm_to_vmem [thread:$0]  %s1, 25088, %s221, [#allocation6], 256, 256, 16
        $region16: #{tpu_custom_call.1} parent=11 // pred_fallthru
          _
        // Predicated region
        $region17: #{tpu_custom_call.1} parent=11 // pred_check
          %p227 = pneg %p89
        $region18: #{tpu_custom_call.1} parent=11 // pred_check_branch
          %229 = sbr.rel (%p227) target = $region20
        $region19: #{tpu_custom_call.1} parent=11 // pred_region
          _
        $region20: #{tpu_custom_call.1} parent=11 // pred_fallthru
          _
        // Predicated region
        $region21: #{tpu_custom_call.1} parent=11 // pred_check
          %p230 = pneg %p110
        $region22: #{tpu_custom_call.1} parent=11 // pred_check_branch
          %232 = sbr.rel (%p230) target = $region24
        $region23: #{tpu_custom_call.1} parent=11 // pred_region
          %s234 = ssub.s32 4096, 4096
          %235 = vsyncadd [#allocation6], %s234
          %s236 = sshll.u32 [#allocation7], 4
          %s237 = int_to_ptr.vmem [resolvable:$true] %s236
          %242 = dma.hbm_to_vmem [thread:$0]  %s3, 4096, %s237, [#allocation6], 64, 64, 4
        $region24: #{tpu_custom_call.1} parent=11 // pred_fallthru
          _
        // Predicated region
        $region25: #{tpu_custom_call.1} parent=11 // pred_check
          %p243 = pneg %p131
        $region26: #{tpu_custom_call.1} parent=11 // pred_check_branch
          %245 = sbr.rel (%p243) target = $region28
        $region27: #{tpu_custom_call.1} parent=11 // pred_region
          _
        $region28: #{tpu_custom_call.1} parent=11 // pred_fallthru
          _
        // Predicated region
        $region29: #{tpu_custom_call.1} parent=11 // pred_check
          %p246 = pneg %p152
        $region30: #{tpu_custom_call.1} parent=11 // pred_check_branch
          %248 = sbr.rel (%p246) target = $region32
        $region31: #{tpu_custom_call.1} parent=11 // pred_region
          %s250 = ssub.s32 1024, 1024
          %251 = vsyncadd [#allocation9], %s250
          %s252 = sshll.u32 [#allocation8], 4
          %s253 = int_to_ptr.vmem [resolvable:$true] %s252
          %258 = dma.hbm_to_vmem [thread:$0]  %s5, 1024, %s253, [#allocation9], 64, 64, 4
        $region32: #{tpu_custom_call.1} parent=11 // pred_fallthru
          _
        // Predicated region
        $region33: #{tpu_custom_call.1} parent=11 // pred_check
          %p259 = pneg %p173
        $region34: #{tpu_custom_call.1} parent=11 // pred_check_branch
          %261 = sbr.rel (%p259) target = $region36
        $region35: #{tpu_custom_call.1} parent=11 // pred_region
          _
        $region36: #{tpu_custom_call.1} parent=11 // pred_fallthru
          _
      $region12: #{tpu_custom_call.1} parent=5 // pred_fallthru
        _
      %p262 = scmp.lt.s32.totalorder %s21, 2
      // Predicated region
      $region37: #{tpu_custom_call.1} parent=5 // pred_check
        %p263 = pneg %p262
      $region38: #{tpu_custom_call.1} parent=5 // pred_check_branch
        %265 = sbr.rel (%p263) target = $region40
      $region39: #{tpu_custom_call.1} parent=5 // pred_region
        // Predicated region
        $region41: #{tpu_custom_call.1} parent=39 // pred_check
          %p266 = pneg %p41
        $region42: #{tpu_custom_call.1} parent=39 // pred_check_branch
          %268 = sbr.rel (%p266) target = $region44
        $region43: #{tpu_custom_call.1} parent=39 // pred_region
          %s269 = sand.u32 %s31, 1
          %s270 = scalar_lea.sflag [#allocation3], %s269
          %s271 = sand.u32 %s31, 1
          %s272 = smul.addr %s271, 56
          %s273 = scalar_lea.vmem [#allocation2], %s272
          %s274 = smul.u32 2, %s21
          %s276 = ssub.s32 896, 896
          %277 = vsyncadd %s270, %s276
          %s278 = smul.addr %s274, 7
          %s279 = smul.addr %s278, 64
          %s280 = scalar_lea.hbm %s0, %s279
          %s281 = sshll.u32 %s273, 4
          %s282 = int_to_ptr.vmem [resolvable:$true] %s281
          %287 = dma.hbm_to_vmem [thread:$0]  %s280, 896, %s282, %s270, 448, 448, 28
        $region44: #{tpu_custom_call.1} parent=39 // pred_fallthru
          _
      $region40: #{tpu_custom_call.1} parent=5 // pred_fallthru
        _
      %p288 = scmp.le.s32.totalorder 1, %s21
      %p289 = scmp.lt.s32.totalorder %s21, 3
      %p290 = pnand %p288, %p289
      %p291 = pneg %p290
      // Predicated region
      $region45: #{tpu_custom_call.1} parent=5 // pred_check
        _
      $region46: #{tpu_custom_call.1} parent=5 // pred_check_branch
        %293 = sbr.rel (%p290) target = $region48
      $region47: #{tpu_custom_call.1} parent=5 // pred_region
        %s294 = ssub.s32 %s21, 1
        %s295 = sand.u32 %s34, 1
        %s296 = scalar_lea.sflag [#allocation3], %s295
        %s297 = sand.u32 %s34, 1
        %s298 = smul.addr %s297, 56
        %s299 = scalar_lea.vmem [#allocation2], %s298
        // Predicated region
        $region49: #{tpu_custom_call.1} parent=47 // pred_check
          %p300 = pneg %p47
        $region50: #{tpu_custom_call.1} parent=47 // pred_check_branch
          %302 = sbr.rel (%p300) target = $region52
        $region51: #{tpu_custom_call.1} parent=47 // pred_region
          %303 = dma.done %s296, 896
        $region52: #{tpu_custom_call.1} parent=47 // pred_fallthru
          _
        // Predicated region
        $region53: #{tpu_custom_call.1} parent=47 // pred_check
          %p304 = pneg %p68
        $region54: #{tpu_custom_call.1} parent=47 // pred_check_branch
          %306 = sbr.rel (%p304) target = $region56
        $region55: #{tpu_custom_call.1} parent=47 // pred_region
          %307 = dma.done [#allocation6], 25088
        $region56: #{tpu_custom_call.1} parent=47 // pred_fallthru
          _
        // Predicated region
        $region57: #{tpu_custom_call.1} parent=47 // pred_check
          %p308 = pneg %p110
        $region58: #{tpu_custom_call.1} parent=47 // pred_check_branch
          %310 = sbr.rel (%p308) target = $region60
        $region59: #{tpu_custom_call.1} parent=47 // pred_region
          %311 = dma.done [#allocation6], 4096
        $region60: #{tpu_custom_call.1} parent=47 // pred_fallthru
          _
        // Predicated region
        $region61: #{tpu_custom_call.1} parent=47 // pred_check
          %p312 = pneg %p152
        $region62: #{tpu_custom_call.1} parent=47 // pred_check_branch
          %314 = sbr.rel (%p312) target = $region64
        $region63: #{tpu_custom_call.1} parent=47 // pred_region
          %315 = dma.done [#allocation9], 1024
        $region64: #{tpu_custom_call.1} parent=47 // pred_fallthru
          _
        %s316 = sand.u32 %s34, 1
        %s317 = scalar_lea.sflag [#allocation3], %s316
        %s318 = sand.u32 %s34, 1
        %s319 = smul.addr %s318, 56
        %s320 = scalar_lea.vmem [#allocation2], %s319
        %p321 = pneg %p47
        %p322 = pneg %p44
        %p323 = pneg %p68
        %p324 = pneg %p65
        %p325 = pneg %p89
        %p326 = pneg %p86
        %p327 = pneg %p110
        %p328 = pneg %p107
        %p329 = pneg %p131
        %p330 = pneg %p128
        %p331 = pneg %p152
        %p332 = pneg %p149
        %p333 = pneg %p173
        %p334 = pneg %p170
        %p335 = pneg %p199
        %p336 = pneg %p196
        %s337 = sand.u32 %s186, 1
        %s338 = scalar_lea.sflag [#allocation4], %s337
        %s339 = sand.u32 %s186, 1
        %s340 = smul.addr %s339, 8
        %s341 = scalar_lea.vmem [#allocation10], %s340
        %s342 = smul.u32 2, %s26
        %s343 = smul.u32 2, %s26
        %v345 = vld [vmem:[%s299] sm:$0xff]
        %v346 = vld [vmem:[%s299 + $0x8] sm:$0xff]
        %v347 = vld [vmem:[%s299 + $0x10] sm:$0xff]
        %v348 = vld [vmem:[%s299 + $0x18] sm:$0xf]
        %v349 = vld [vmem:[%s299 + $0x1c] sm:$0xff]
        %v350 = vld [vmem:[%s299 + $0x24] sm:$0xff]
        %v351 = vld [vmem:[%s299 + $0x2c] sm:$0xff]
        %v352 = vld [vmem:[%s299 + $0x34] sm:$0xf]
        %v353 = vld [vmem:[#allocation5] sm:$0xff]
        %v354 = vld [vmem:[#allocation5 + $0x8] sm:$0xff]
        %v355 = vld [vmem:[#allocation5 + $0x10] sm:$0xff]
        %v356 = vld [vmem:[#allocation5 + $0x18] sm:$0xff]
        %v357 = vld [vmem:[#allocation5 + $0x20] sm:$0xff]
        %v358 = vld [vmem:[#allocation5 + $0x28] sm:$0xff]
        %v359 = vld [vmem:[#allocation5 + $0x30] sm:$0xff]
        %v360 = vld [vmem:[#allocation5 + $0x38] sm:$0xff]
        %v361 = vld [vmem:[#allocation5 + $0x40] sm:$0xff]
        %v362 = vld [vmem:[#allocation5 + $0x48] sm:$0xff]
        %v363 = vld [vmem:[#allocation5 + $0x50] sm:$0xff]
        %v364 = vld [vmem:[#allocation5 + $0x58] sm:$0xff]
        %v365 = vld [vmem:[#allocation5 + $0x60] sm:$0xff]
        %v366 = vld [vmem:[#allocation5 + $0x68] sm:$0xff]
        %v367 = vld [vmem:[#allocation5 + $0x70] sm:$0xff]
        %v368 = vld [vmem:[#allocation5 + $0x78] sm:$0xff]
        %v369 = vld [vmem:[#allocation5 + $0x80] sm:$0xff]
        %v370 = vld [vmem:[#allocation5 + $0x88] sm:$0xff]
        %v371 = vld [vmem:[#allocation5 + $0x90] sm:$0xff]
        %v372 = vld [vmem:[#allocation5 + $0x98] sm:$0xff]
        %v373 = vld [vmem:[#allocation5 + $0xa0] sm:$0xff]
        %v374 = vld [vmem:[#allocation5 + $0xa8] sm:$0xff]
        %v375 = vld [vmem:[#allocation5 + $0xb0] sm:$0xff]
        %v376 = vld [vmem:[#allocation5 + $0xb8] sm:$0xff]
        %v377 = vld [vmem:[#allocation5 + $0xc0] sm:$0xff]
        %v378 = vld [vmem:[#allocation5 + $0xc8] sm:$0xff]
        %v379 = vld [vmem:[#allocation5 + $0xd0] sm:$0xff]
        %v380 = vld [vmem:[#allocation5 + $0xd8] sm:$0xff]
        %v381 = vld [vmem:[#allocation5 + $0xe0] sm:$0xff]
        %v382 = vld [vmem:[#allocation5 + $0xe8] sm:$0xff]
        %v383 = vld [vmem:[#allocation5 + $0xf0] sm:$0xff]
        %v384 = vld [vmem:[#allocation5 + $0xf8] sm:$0xff]
        %v385 = vld [vmem:[#allocation5 + $0x100] sm:$0xff]
        %v386 = vld [vmem:[#allocation5 + $0x108] sm:$0xff]
        %v387 = vld [vmem:[#allocation5 + $0x110] sm:$0xff]
        %v388 = vld [vmem:[#allocation5 + $0x118] sm:$0xff]
        %v389 = vld [vmem:[#allocation5 + $0x120] sm:$0xff]
        %v390 = vld [vmem:[#allocation5 + $0x128] sm:$0xff]
        %v391 = vld [vmem:[#allocation5 + $0x130] sm:$0xff]
        %v392 = vld [vmem:[#allocation5 + $0x138] sm:$0xff]
        %v393 = vld [vmem:[#allocation5 + $0x140] sm:$0xff]
        %v394 = vld [vmem:[#allocation5 + $0x148] sm:$0xff]
        %v395 = vld [vmem:[#allocation5 + $0x150] sm:$0xff]
        %v396 = vld [vmem:[#allocation5 + $0x158] sm:$0xff]
        %v397 = vld [vmem:[#allocation5 + $0x160] sm:$0xff]
        %v398 = vld [vmem:[#allocation5 + $0x168] sm:$0xff]
        %v399 = vld [vmem:[#allocation5 + $0x170] sm:$0xff]
        %v400 = vld [vmem:[#allocation5 + $0x178] sm:$0xff]
        %v401 = vld [vmem:[#allocation5 + $0x180] sm:$0xff]
        %v402 = vld [vmem:[#allocation5 + $0x188] sm:$0xff]
        %v403 = vld [vmem:[#allocation5 + $0x190] sm:$0xff]
        %v404 = vld [vmem:[#allocation5 + $0x198] sm:$0xff]
        %v405 = vld [vmem:[#allocation5 + $0x1a0] sm:$0xff]
        %v406 = vld [vmem:[#allocation5 + $0x1a8] sm:$0xff]
        %v407 = vld [vmem:[#allocation5 + $0x1b0] sm:$0xff]
        %v408 = vld [vmem:[#allocation5 + $0x1b8] sm:$0xff]
        %v409 = vld [vmem:[#allocation5 + $0x1c0] sm:$0xff]
        %v410 = vld [vmem:[#allocation5 + $0x1c8] sm:$0xff]
        %v411 = vld [vmem:[#allocation5 + $0x1d0] sm:$0xff]
        %v412 = vld [vmem:[#allocation5 + $0x1d8] sm:$0xff]
        %v413 = vld [vmem:[#allocation5 + $0x1e0] sm:$0xff]
        %v414 = vld [vmem:[#allocation5 + $0x1e8] sm:$0xff]
        %v415 = vld [vmem:[#allocation5 + $0x1f0] sm:$0xff]
        %v416 = vld [vmem:[#allocation5 + $0x1f8] sm:$0xff]
        %v417 = vld [vmem:[#allocation5 + $0x200] sm:$0xff]
        %v418 = vld [vmem:[#allocation5 + $0x208] sm:$0xff]
        %v419 = vld [vmem:[#allocation5 + $0x210] sm:$0xff]
        %v420 = vld [vmem:[#allocation5 + $0x218] sm:$0xff]
        %v421 = vld [vmem:[#allocation5 + $0x220] sm:$0xff]
        %v422 = vld [vmem:[#allocation5 + $0x228] sm:$0xff]
        %v423 = vld [vmem:[#allocation5 + $0x230] sm:$0xff]
        %v424 = vld [vmem:[#allocation5 + $0x238] sm:$0xff]
        %v425 = vld [vmem:[#allocation5 + $0x240] sm:$0xff]
        %v426 = vld [vmem:[#allocation5 + $0x248] sm:$0xff]
        %v427 = vld [vmem:[#allocation5 + $0x250] sm:$0xff]
        %v428 = vld [vmem:[#allocation5 + $0x258] sm:$0xff]
        %v429 = vld [vmem:[#allocation5 + $0x260] sm:$0xff]
        %v430 = vld [vmem:[#allocation5 + $0x268] sm:$0xff]
        %v431 = vld [vmem:[#allocation5 + $0x270] sm:$0xff]
        %v432 = vld [vmem:[#allocation5 + $0x278] sm:$0xff]
        %v433 = vld [vmem:[#allocation5 + $0x280] sm:$0xff]
        %v434 = vld [vmem:[#allocation5 + $0x288] sm:$0xff]
        %v435 = vld [vmem:[#allocation5 + $0x290] sm:$0xff]
        %v436 = vld [vmem:[#allocation5 + $0x298] sm:$0xff]
        %v437 = vld [vmem:[#allocation5 + $0x2a0] sm:$0xff]
        %v438 = vld [vmem:[#allocation5 + $0x2a8] sm:$0xff]
        %v439 = vld [vmem:[#allocation5 + $0x2b0] sm:$0xff]
        %v440 = vld [vmem:[#allocation5 + $0x2b8] sm:$0xff]
        %v441 = vld [vmem:[#allocation5 + $0x2c0] sm:$0xff]
        %v442 = vld [vmem:[#allocation5 + $0x2c8] sm:$0xff]
        %v443 = vld [vmem:[#allocation5 + $0x2d0] sm:$0xff]
        %v444 = vld [vmem:[#allocation5 + $0x2d8] sm:$0xff]
        %v445 = vld [vmem:[#allocation5 + $0x2e0] sm:$0xff]
        %v446 = vld [vmem:[#allocation5 + $0x2e8] sm:$0xff]
        %v447 = vld [vmem:[#allocation5 + $0x2f0] sm:$0xff]
        %v448 = vld [vmem:[#allocation5 + $0x2f8] sm:$0xff]
        %v449 = vld [vmem:[#allocation5 + $0x300] sm:$0xff]
        %v450 = vld [vmem:[#allocation5 + $0x308] sm:$0xff]
        %v451 = vld [vmem:[#allocation5 + $0x310] sm:$0xff]
        %v452 = vld [vmem:[#allocation5 + $0x318] sm:$0xff]
        %v453 = vld [vmem:[#allocation5 + $0x320] sm:$0xff]
        %v454 = vld [vmem:[#allocation5 + $0x328] sm:$0xff]
        %v455 = vld [vmem:[#allocation5 + $0x330] sm:$0xff]
        %v456 = vld [vmem:[#allocation5 + $0x338] sm:$0xff]
        %v457 = vld [vmem:[#allocation5 + $0x340] sm:$0xff]
        %v458 = vld [vmem:[#allocation5 + $0x348] sm:$0xff]
        %v459 = vld [vmem:[#allocation5 + $0x350] sm:$0xff]
        %v460 = vld [vmem:[#allocation5 + $0x358] sm:$0xff]
        %v461 = vld [vmem:[#allocation5 + $0x360] sm:$0xff]
        %v462 = vld [vmem:[#allocation5 + $0x368] sm:$0xff]
        %v463 = vld [vmem:[#allocation5 + $0x370] sm:$0xff]
        %v464 = vld [vmem:[#allocation5 + $0x378] sm:$0xff]
        %v465 = vld [vmem:[#allocation5 + $0x380] sm:$0xff]
        %v466 = vld [vmem:[#allocation5 + $0x388] sm:$0xff]
        %v467 = vld [vmem:[#allocation5 + $0x390] sm:$0xff]
        %v468 = vld [vmem:[#allocation5 + $0x398] sm:$0xff]
        %v469 = vld [vmem:[#allocation5 + $0x3a0] sm:$0xff]
        %v470 = vld [vmem:[#allocation5 + $0x3a8] sm:$0xff]
        %v471 = vld [vmem:[#allocation5 + $0x3b0] sm:$0xff]
        %v472 = vld [vmem:[#allocation5 + $0x3b8] sm:$0xff]
        %v473 = vld [vmem:[#allocation5 + $0x3c0] sm:$0xff]
        %v474 = vld [vmem:[#allocation5 + $0x3c8] sm:$0xff]
        %v475 = vld [vmem:[#allocation5 + $0x3d0] sm:$0xff]
        %v476 = vld [vmem:[#allocation5 + $0x3d8] sm:$0xff]
        %v477 = vld [vmem:[#allocation5 + $0x3e0] sm:$0xff]
        %v478 = vld [vmem:[#allocation5 + $0x3e8] sm:$0xff]
        %v479 = vld [vmem:[#allocation5 + $0x3f0] sm:$0xff]
        %v480 = vld [vmem:[#allocation5 + $0x3f8] sm:$0xff]
        %v481 = vld [vmem:[#allocation5 + $0x400] sm:$0xff]
        %v482 = vld [vmem:[#allocation5 + $0x408] sm:$0xff]
        %v483 = vld [vmem:[#allocation5 + $0x410] sm:$0xff]
        %v484 = vld [vmem:[#allocation5 + $0x418] sm:$0xff]
        %v485 = vld [vmem:[#allocation5 + $0x420] sm:$0xff]
        %v486 = vld [vmem:[#allocation5 + $0x428] sm:$0xff]
        %v487 = vld [vmem:[#allocation5 + $0x430] sm:$0xff]
        %v488 = vld [vmem:[#allocation5 + $0x438] sm:$0xff]
        %v489 = vld [vmem:[#allocation5 + $0x440] sm:$0xff]
        %v490 = vld [vmem:[#allocation5 + $0x448] sm:$0xff]
        %v491 = vld [vmem:[#allocation5 + $0x450] sm:$0xff]
        %v492 = vld [vmem:[#allocation5 + $0x458] sm:$0xff]
        %v493 = vld [vmem:[#allocation5 + $0x460] sm:$0xff]
        %v494 = vld [vmem:[#allocation5 + $0x468] sm:$0xff]
        %v495 = vld [vmem:[#allocation5 + $0x470] sm:$0xff]
        %v496 = vld [vmem:[#allocation5 + $0x478] sm:$0xff]
        %v497 = vld [vmem:[#allocation5 + $0x480] sm:$0xff]
        %v498 = vld [vmem:[#allocation5 + $0x488] sm:$0xff]
        %v499 = vld [vmem:[#allocation5 + $0x490] sm:$0xff]
        %v500 = vld [vmem:[#allocation5 + $0x498] sm:$0xff]
        %v501 = vld [vmem:[#allocation5 + $0x4a0] sm:$0xff]
        %v502 = vld [vmem:[#allocation5 + $0x4a8] sm:$0xff]
        %v503 = vld [vmem:[#allocation5 + $0x4b0] sm:$0xff]
        %v504 = vld [vmem:[#allocation5 + $0x4b8] sm:$0xff]
        %v505 = vld [vmem:[#allocation5 + $0x4c0] sm:$0xff]
        %v506 = vld [vmem:[#allocation5 + $0x4c8] sm:$0xff]
        %v507 = vld [vmem:[#allocation5 + $0x4d0] sm:$0xff]
        %v508 = vld [vmem:[#allocation5 + $0x4d8] sm:$0xff]
        %v509 = vld [vmem:[#allocation5 + $0x4e0] sm:$0xff]
        %v510 = vld [vmem:[#allocation5 + $0x4e8] sm:$0xff]
        %v511 = vld [vmem:[#allocation5 + $0x4f0] sm:$0xff]
        %v512 = vld [vmem:[#allocation5 + $0x4f8] sm:$0xff]
        %v513 = vld [vmem:[#allocation5 + $0x500] sm:$0xff]
        %v514 = vld [vmem:[#allocation5 + $0x508] sm:$0xff]
        %v515 = vld [vmem:[#allocation5 + $0x510] sm:$0xff]
        %v516 = vld [vmem:[#allocation5 + $0x518] sm:$0xff]
        %v517 = vld [vmem:[#allocation5 + $0x520] sm:$0xff]
        %v518 = vld [vmem:[#allocation5 + $0x528] sm:$0xff]
        %v519 = vld [vmem:[#allocation5 + $0x530] sm:$0xff]
        %v520 = vld [vmem:[#allocation5 + $0x538] sm:$0xff]
        %v521 = vld [vmem:[#allocation5 + $0x540] sm:$0xff]
        %v522 = vld [vmem:[#allocation5 + $0x548] sm:$0xff]
        %v523 = vld [vmem:[#allocation5 + $0x550] sm:$0xff]
        %v524 = vld [vmem:[#allocation5 + $0x558] sm:$0xff]
        %v525 = vld [vmem:[#allocation5 + $0x560] sm:$0xff]
        %v526 = vld [vmem:[#allocation5 + $0x568] sm:$0xff]
        %v527 = vld [vmem:[#allocation5 + $0x570] sm:$0xff]
        %v528 = vld [vmem:[#allocation5 + $0x578] sm:$0xff]
        %v529 = vld [vmem:[#allocation5 + $0x580] sm:$0xff]
        %v530 = vld [vmem:[#allocation5 + $0x588] sm:$0xff]
        %v531 = vld [vmem:[#allocation5 + $0x590] sm:$0xff]
        %v532 = vld [vmem:[#allocation5 + $0x598] sm:$0xff]
        %v533 = vld [vmem:[#allocation5 + $0x5a0] sm:$0xff]
        %v534 = vld [vmem:[#allocation5 + $0x5a8] sm:$0xff]
        %v535 = vld [vmem:[#allocation5 + $0x5b0] sm:$0xff]
        %v536 = vld [vmem:[#allocation5 + $0x5b8] sm:$0xff]
        %v537 = vld [vmem:[#allocation5 + $0x5c0] sm:$0xff]
        %v538 = vld [vmem:[#allocation5 + $0x5c8] sm:$0xff]
        %v539 = vld [vmem:[#allocation5 + $0x5d0] sm:$0xff]
        %v540 = vld [vmem:[#allocation5 + $0x5d8] sm:$0xff]
        %v541 = vld [vmem:[#allocation5 + $0x5e0] sm:$0xff]
        %v542 = vld [vmem:[#allocation5 + $0x5e8] sm:$0xff]
        %v543 = vld [vmem:[#allocation5 + $0x5f0] sm:$0xff]
        %v544 = vld [vmem:[#allocation5 + $0x5f8] sm:$0xff]
        %v545 = vld [vmem:[#allocation5 + $0x600] sm:$0xff]
        %v546 = vld [vmem:[#allocation5 + $0x608] sm:$0xff]
        %v547 = vld [vmem:[#allocation5 + $0x610] sm:$0xff]
        %v548 = vld [vmem:[#allocation5 + $0x618] sm:$0xff]
        %v549 = vld [vmem:[%s2] sm:$0xf]
        %v551 = vlaneseq
        %v552 = vshrl.u32 %v551, 7
        %v553 = vsub.s32 0, %v552
        %v554 = vrot.slane %v549, %v553
        %v555 = vlaneseq
        %v556 = vshrl.u32 %v555, 7
        %v557 = vsub.s32 1, %v556
        %v558 = vrot.slane %v549, %v557
        %v559 = vlaneseq
        %v560 = vshrl.u32 %v559, 7
        %v561 = vsub.s32 2, %v560
        %v562 = vrot.slane %v549, %v561
        %v563 = vlaneseq
        %v564 = vshrl.u32 %v563, 7
        %v565 = vsub.s32 3, %v564
        %v566 = vrot.slane %v549, %v565
        %v579 = vunpack.c.l.b16 %v345
        %v580 = vunpack.c.h.b16 %v345
        %v581 = vunpack.c.l.b16 %v346
        %v582 = vunpack.c.h.b16 %v346
        %v583 = vunpack.c.l.b16 %v347
        %v584 = vunpack.c.h.b16 %v347
        %v585 = vunpack.c.l.b16 %v348
        %v586 = vunpack.c.l.b16 %v349
        %v587 = vunpack.c.h.b16 %v349
        %v588 = vunpack.c.l.b16 %v350
        %v589 = vunpack.c.h.b16 %v350
        %v590 = vunpack.c.l.b16 %v351
        %v591 = vunpack.c.h.b16 %v351
        %v592 = vunpack.c.l.b16 %v352
        %v593 = vpack.c.b16 %v586, %v579
        %v594 = vpack.c.b16 %v587, %v580
        %v595 = vpack.c.b16 %v588, %v581
        %v596 = vpack.c.b16 %v589, %v582
        %v597 = vpack.c.b16 %v590, %v583
        %v598 = vpack.c.b16 %v591, %v584
        %v599 = vpack.c.b16 %v592, %v585
        %v802 = vunpack.c.l.b16 %v353
        %v803 = vunpack.c.h.b16 %v353
        %v804 = vunpack.c.l.b16 %v354
        %v805 = vunpack.c.h.b16 %v354
        %v806 = vunpack.c.l.b16 %v355
        %v807 = vunpack.c.h.b16 %v355
        %v808 = vunpack.c.l.b16 %v356
        %v809 = vunpack.c.h.b16 %v356
        %v810 = vunpack.c.l.b16 %v357
        %v811 = vunpack.c.h.b16 %v357
        %v812 = vunpack.c.l.b16 %v358
        %v813 = vunpack.c.h.b16 %v358
        %v814 = vunpack.c.l.b16 %v359
        %v815 = vunpack.c.h.b16 %v359
        %v816 = vunpack.c.l.b16 %v360
        %v817 = vunpack.c.h.b16 %v360
        %v818 = vunpack.c.l.b16 %v361
        %v819 = vunpack.c.h.b16 %v361
        %v820 = vunpack.c.l.b16 %v362
        %v821 = vunpack.c.h.b16 %v362
        %v822 = vunpack.c.l.b16 %v363
        %v823 = vunpack.c.h.b16 %v363
        %v824 = vunpack.c.l.b16 %v364
        %v825 = vunpack.c.h.b16 %v364
        %v826 = vunpack.c.l.b16 %v365
        %v827 = vunpack.c.h.b16 %v365
        %v828 = vunpack.c.l.b16 %v366
        %v829 = vunpack.c.h.b16 %v366
        %v830 = vunpack.c.l.b16 %v367
        %v831 = vunpack.c.h.b16 %v367
        %v832 = vunpack.c.l.b16 %v368
        %v833 = vunpack.c.h.b16 %v368
        %v834 = vunpack.c.l.b16 %v369
        %v835 = vunpack.c.h.b16 %v369
        %v836 = vunpack.c.l.b16 %v370
        %v837 = vunpack.c.h.b16 %v370
        %v838 = vunpack.c.l.b16 %v371
        %v839 = vunpack.c.h.b16 %v371
        %v840 = vunpack.c.l.b16 %v372
        %v841 = vunpack.c.h.b16 %v372
        %v842 = vunpack.c.l.b16 %v373
        %v843 = vunpack.c.h.b16 %v373
        %v844 = vunpack.c.l.b16 %v374
        %v845 = vunpack.c.h.b16 %v374
        %v846 = vunpack.c.l.b16 %v375
        %v847 = vunpack.c.h.b16 %v375
        %v848 = vunpack.c.l.b16 %v376
        %v849 = vunpack.c.h.b16 %v376
        %v850 = vunpack.c.l.b16 %v377
        %v851 = vunpack.c.h.b16 %v377
        %v852 = vunpack.c.l.b16 %v378
        %v853 = vunpack.c.h.b16 %v378
        %v854 = vunpack.c.l.b16 %v379
        %v855 = vunpack.c.h.b16 %v379
        %v856 = vunpack.c.l.b16 %v380
        %v857 = vunpack.c.h.b16 %v380
        %v858 = vunpack.c.l.b16 %v381
        %v859 = vunpack.c.h.b16 %v381
        %v860 = vunpack.c.l.b16 %v382
        %v861 = vunpack.c.h.b16 %v382
        %v862 = vunpack.c.l.b16 %v383
        %v863 = vunpack.c.h.b16 %v383
        %v864 = vunpack.c.l.b16 %v384
        %v865 = vunpack.c.h.b16 %v384
        %v866 = vunpack.c.l.b16 %v385
        %v867 = vunpack.c.h.b16 %v385
        %v868 = vunpack.c.l.b16 %v386
        %v869 = vunpack.c.h.b16 %v386
        %v870 = vunpack.c.l.b16 %v387
        %v871 = vunpack.c.h.b16 %v387
        %v872 = vunpack.c.l.b16 %v388
        %v873 = vunpack.c.h.b16 %v388
        %v874 = vunpack.c.l.b16 %v389
        %v875 = vunpack.c.h.b16 %v389
        %v876 = vunpack.c.l.b16 %v390
        %v877 = vunpack.c.h.b16 %v390
        %v878 = vunpack.c.l.b16 %v391
        %v879 = vunpack.c.h.b16 %v391
        %v880 = vunpack.c.l.b16 %v392
        %v881 = vunpack.c.h.b16 %v392
        %v882 = vunpack.c.l.b16 %v393
        %v883 = vunpack.c.h.b16 %v393
        %v884 = vunpack.c.l.b16 %v394
        %v885 = vunpack.c.h.b16 %v394
        %v886 = vunpack.c.l.b16 %v395
        %v887 = vunpack.c.h.b16 %v395
        %v888 = vunpack.c.l.b16 %v396
        %v889 = vunpack.c.h.b16 %v396
        %v890 = vunpack.c.l.b16 %v397
        %v891 = vunpack.c.h.b16 %v397
        %v892 = vunpack.c.l.b16 %v398
        %v893 = vunpack.c.h.b16 %v398
        %v894 = vunpack.c.l.b16 %v399
        %v895 = vunpack.c.h.b16 %v399
        %v896 = vunpack.c.l.b16 %v400
        %v897 = vunpack.c.h.b16 %v400
        %v898 = vunpack.c.l.b16 %v401
        %v899 = vunpack.c.h.b16 %v401
        %v900 = vunpack.c.l.b16 %v402
        %v901 = vunpack.c.h.b16 %v402
        %v902 = vunpack.c.l.b16 %v403
        %v903 = vunpack.c.h.b16 %v403
        %v904 = vunpack.c.l.b16 %v404
        %v905 = vunpack.c.h.b16 %v404
        %v906 = vunpack.c.l.b16 %v405
        %v907 = vunpack.c.h.b16 %v405
        %v908 = vunpack.c.l.b16 %v406
        %v909 = vunpack.c.h.b16 %v406
        %v910 = vunpack.c.l.b16 %v407
        %v911 = vunpack.c.h.b16 %v407
        %v912 = vunpack.c.l.b16 %v408
        %v913 = vunpack.c.h.b16 %v408
        %v914 = vunpack.c.l.b16 %v409
        %v915 = vunpack.c.h.b16 %v409
        %v916 = vunpack.c.l.b16 %v410
        %v917 = vunpack.c.h.b16 %v410
        %v918 = vunpack.c.l.b16 %v411
        %v919 = vunpack.c.h.b16 %v411
        %v920 = vunpack.c.l.b16 %v412
        %v921 = vunpack.c.h.b16 %v412
        %v922 = vunpack.c.l.b16 %v413
        %v923 = vunpack.c.h.b16 %v413
        %v924 = vunpack.c.l.b16 %v414
        %v925 = vunpack.c.h.b16 %v414
        %v926 = vunpack.c.l.b16 %v415
        %v927 = vunpack.c.h.b16 %v415
        %v928 = vunpack.c.l.b16 %v416
        %v929 = vunpack.c.h.b16 %v416
        %v930 = vunpack.c.l.b16 %v417
        %v931 = vunpack.c.h.b16 %v417
        %v932 = vunpack.c.l.b16 %v418
        %v933 = vunpack.c.h.b16 %v418
        %v934 = vunpack.c.l.b16 %v419
        %v935 = vunpack.c.h.b16 %v419
        %v936 = vunpack.c.l.b16 %v420
        %v937 = vunpack.c.h.b16 %v420
        %v938 = vunpack.c.l.b16 %v421
        %v939 = vunpack.c.h.b16 %v421
        %v940 = vunpack.c.l.b16 %v422
        %v941 = vunpack.c.h.b16 %v422
        %v942 = vunpack.c.l.b16 %v423
        %v943 = vunpack.c.h.b16 %v423
        %v944 = vunpack.c.l.b16 %v424
        %v945 = vunpack.c.h.b16 %v424
        %v946 = vunpack.c.l.b16 %v425
        %v947 = vunpack.c.h.b16 %v425
        %v948 = vunpack.c.l.b16 %v426
        %v949 = vunpack.c.h.b16 %v426
        %v950 = vunpack.c.l.b16 %v427
        %v951 = vunpack.c.h.b16 %v427
        %v952 = vunpack.c.l.b16 %v428
        %v953 = vunpack.c.h.b16 %v428
        %v954 = vunpack.c.l.b16 %v429
        %v955 = vunpack.c.h.b16 %v429
        %v956 = vunpack.c.l.b16 %v430
        %v957 = vunpack.c.h.b16 %v430
        %v958 = vunpack.c.l.b16 %v431
        %v959 = vunpack.c.h.b16 %v431
        %v960 = vunpack.c.l.b16 %v432
        %v961 = vunpack.c.h.b16 %v432
        %v962 = vunpack.c.l.b16 %v433
        %v963 = vunpack.c.h.b16 %v433
        %v964 = vunpack.c.l.b16 %v434
        %v965 = vunpack.c.h.b16 %v434
        %v966 = vunpack.c.l.b16 %v435
        %v967 = vunpack.c.h.b16 %v435
        %v968 = vunpack.c.l.b16 %v436
        %v969 = vunpack.c.h.b16 %v436
        %v970 = vunpack.c.l.b16 %v437
        %v971 = vunpack.c.h.b16 %v437
        %v972 = vunpack.c.l.b16 %v438
        %v973 = vunpack.c.h.b16 %v438
        %v974 = vunpack.c.l.b16 %v439
        %v975 = vunpack.c.h.b16 %v439
        %v976 = vunpack.c.l.b16 %v440
        %v977 = vunpack.c.h.b16 %v440
        %v978 = vunpack.c.l.b16 %v441
        %v979 = vunpack.c.h.b16 %v441
        %v980 = vunpack.c.l.b16 %v442
        %v981 = vunpack.c.h.b16 %v442
        %v982 = vunpack.c.l.b16 %v443
        %v983 = vunpack.c.h.b16 %v443
        %v984 = vunpack.c.l.b16 %v444
        %v985 = vunpack.c.h.b16 %v444
        %v986 = vunpack.c.l.b16 %v445
        %v987 = vunpack.c.h.b16 %v445
        %v988 = vunpack.c.l.b16 %v446
        %v989 = vunpack.c.h.b16 %v446
        %v990 = vunpack.c.l.b16 %v447
        %v991 = vunpack.c.h.b16 %v447
        %v992 = vunpack.c.l.b16 %v448
        %v993 = vunpack.c.h.b16 %v448
        %v994 = vunpack.c.l.b16 %v449
        %v995 = vunpack.c.h.b16 %v449
        %v996 = vunpack.c.l.b16 %v450
        %v997 = vunpack.c.h.b16 %v450
        %v998 = vunpack.c.l.b16 %v451
        %v999 = vunpack.c.h.b16 %v451
        %v1000 = vunpack.c.l.b16 %v452
        %v1001 = vunpack.c.h.b16 %v452
        %v1002 = vunpack.c.l.b16 %v453
        %v1003 = vunpack.c.h.b16 %v453
        %v1004 = vunpack.c.l.b16 %v454
        %v1005 = vunpack.c.h.b16 %v454
        %v1006 = vunpack.c.l.b16 %v455
        %v1007 = vunpack.c.h.b16 %v455
        %v1008 = vunpack.c.l.b16 %v456
        %v1009 = vunpack.c.h.b16 %v456
        %v1010 = vunpack.c.l.b16 %v457
        %v1011 = vunpack.c.h.b16 %v457
        %v1012 = vunpack.c.l.b16 %v458
        %v1013 = vunpack.c.h.b16 %v458
        %v1014 = vunpack.c.l.b16 %v459
        %v1015 = vunpack.c.h.b16 %v459
        %v1016 = vunpack.c.l.b16 %v460
        %v1017 = vunpack.c.h.b16 %v460
        %v1018 = vunpack.c.l.b16 %v461
        %v1019 = vunpack.c.h.b16 %v461
        %v1020 = vunpack.c.l.b16 %v462
        %v1021 = vunpack.c.h.b16 %v462
        %v1022 = vunpack.c.l.b16 %v463
        %v1023 = vunpack.c.h.b16 %v463
        %v1024 = vunpack.c.l.b16 %v464
        %v1025 = vunpack.c.h.b16 %v464
        %v1026 = vunpack.c.l.b16 %v465
        %v1027 = vunpack.c.h.b16 %v465
        %v1028 = vunpack.c.l.b16 %v466
        %v1029 = vunpack.c.h.b16 %v466
        %v1030 = vunpack.c.l.b16 %v467
        %v1031 = vunpack.c.h.b16 %v467
        %v1032 = vunpack.c.l.b16 %v468
        %v1033 = vunpack.c.h.b16 %v468
        %v1034 = vunpack.c.l.b16 %v469
        %v1035 = vunpack.c.h.b16 %v469
        %v1036 = vunpack.c.l.b16 %v470
        %v1037 = vunpack.c.h.b16 %v470
        %v1038 = vunpack.c.l.b16 %v471
        %v1039 = vunpack.c.h.b16 %v471
        %v1040 = vunpack.c.l.b16 %v472
        %v1041 = vunpack.c.h.b16 %v472
        %v1042 = vunpack.c.l.b16 %v473
        %v1043 = vunpack.c.h.b16 %v473
        %v1044 = vunpack.c.l.b16 %v474
        %v1045 = vunpack.c.h.b16 %v474
        %v1046 = vunpack.c.l.b16 %v475
        %v1047 = vunpack.c.h.b16 %v475
        %v1048 = vunpack.c.l.b16 %v476
        %v1049 = vunpack.c.h.b16 %v476
        %v1050 = vunpack.c.l.b16 %v477
        %v1051 = vunpack.c.h.b16 %v477
        %v1052 = vunpack.c.l.b16 %v478
        %v1053 = vunpack.c.h.b16 %v478
        %v1054 = vunpack.c.l.b16 %v479
        %v1055 = vunpack.c.h.b16 %v479
        %v1056 = vunpack.c.l.b16 %v480
        %v1057 = vunpack.c.h.b16 %v480
        %v1058 = vunpack.c.l.b16 %v481
        %v1059 = vunpack.c.h.b16 %v481
        %v1060 = vunpack.c.l.b16 %v482
        %v1061 = vunpack.c.h.b16 %v482
        %v1062 = vunpack.c.l.b16 %v483
        %v1063 = vunpack.c.h.b16 %v483
        %v1064 = vunpack.c.l.b16 %v484
        %v1065 = vunpack.c.h.b16 %v484
        %v1066 = vunpack.c.l.b16 %v485
        %v1067 = vunpack.c.h.b16 %v485
        %v1068 = vunpack.c.l.b16 %v486
        %v1069 = vunpack.c.h.b16 %v486
        %v1070 = vunpack.c.l.b16 %v487
        %v1071 = vunpack.c.h.b16 %v487
        %v1072 = vunpack.c.l.b16 %v488
        %v1073 = vunpack.c.h.b16 %v488
        %v1074 = vunpack.c.l.b16 %v489
        %v1075 = vunpack.c.h.b16 %v489
        %v1076 = vunpack.c.l.b16 %v490
        %v1077 = vunpack.c.h.b16 %v490
        %v1078 = vunpack.c.l.b16 %v491
        %v1079 = vunpack.c.h.b16 %v491
        %v1080 = vunpack.c.l.b16 %v492
        %v1081 = vunpack.c.h.b16 %v492
        %v1082 = vunpack.c.l.b16 %v493
        %v1083 = vunpack.c.h.b16 %v493
        %v1084 = vunpack.c.l.b16 %v494
        %v1085 = vunpack.c.h.b16 %v494
        %v1086 = vunpack.c.l.b16 %v495
        %v1087 = vunpack.c.h.b16 %v495
        %v1088 = vunpack.c.l.b16 %v496
        %v1089 = vunpack.c.h.b16 %v496
        %v1090 = vunpack.c.l.b16 %v497
        %v1091 = vunpack.c.h.b16 %v497
        %v1092 = vunpack.c.l.b16 %v498
        %v1093 = vunpack.c.h.b16 %v498
        %v1094 = vunpack.c.l.b16 %v499
        %v1095 = vunpack.c.h.b16 %v499
        %v1096 = vunpack.c.l.b16 %v500
        %v1097 = vunpack.c.h.b16 %v500
        %v1098 = vunpack.c.l.b16 %v501
        %v1099 = vunpack.c.h.b16 %v501
        %v1100 = vunpack.c.l.b16 %v502
        %v1101 = vunpack.c.h.b16 %v502
        %v1102 = vunpack.c.l.b16 %v503
        %v1103 = vunpack.c.h.b16 %v503
        %v1104 = vunpack.c.l.b16 %v504
        %v1105 = vunpack.c.h.b16 %v504
        %v1106 = vunpack.c.l.b16 %v505
        %v1107 = vunpack.c.h.b16 %v505
        %v1108 = vunpack.c.l.b16 %v506
        %v1109 = vunpack.c.h.b16 %v506
        %v1110 = vunpack.c.l.b16 %v507
        %v1111 = vunpack.c.h.b16 %v507
        %v1112 = vunpack.c.l.b16 %v508
        %v1113 = vunpack.c.h.b16 %v508
        %v1114 = vunpack.c.l.b16 %v509
        %v1115 = vunpack.c.h.b16 %v509
        %v1116 = vunpack.c.l.b16 %v510
        %v1117 = vunpack.c.h.b16 %v510
        %v1118 = vunpack.c.l.b16 %v511
        %v1119 = vunpack.c.h.b16 %v511
        %v1120 = vunpack.c.l.b16 %v512
        %v1121 = vunpack.c.h.b16 %v512
        %v1122 = vunpack.c.l.b16 %v513
        %v1123 = vunpack.c.h.b16 %v513
        %v1124 = vunpack.c.l.b16 %v514
        %v1125 = vunpack.c.h.b16 %v514
        %v1126 = vunpack.c.l.b16 %v515
        %v1127 = vunpack.c.h.b16 %v515
        %v1128 = vunpack.c.l.b16 %v516
        %v1129 = vunpack.c.h.b16 %v516
        %v1130 = vunpack.c.l.b16 %v517
        %v1131 = vunpack.c.h.b16 %v517
        %v1132 = vunpack.c.l.b16 %v518
        %v1133 = vunpack.c.h.b16 %v518
        %v1134 = vunpack.c.l.b16 %v519
        %v1135 = vunpack.c.h.b16 %v519
        %v1136 = vunpack.c.l.b16 %v520
        %v1137 = vunpack.c.h.b16 %v520
        %v1138 = vunpack.c.l.b16 %v521
        %v1139 = vunpack.c.h.b16 %v521
        %v1140 = vunpack.c.l.b16 %v522
        %v1141 = vunpack.c.h.b16 %v522
        %v1142 = vunpack.c.l.b16 %v523
        %v1143 = vunpack.c.h.b16 %v523
        %v1144 = vunpack.c.l.b16 %v524
        %v1145 = vunpack.c.h.b16 %v524
        %v1146 = vunpack.c.l.b16 %v525
        %v1147 = vunpack.c.h.b16 %v525
        %v1148 = vunpack.c.l.b16 %v526
        %v1149 = vunpack.c.h.b16 %v526
        %v1150 = vunpack.c.l.b16 %v527
        %v1151 = vunpack.c.h.b16 %v527
        %v1152 = vunpack.c.l.b16 %v528
        %v1153 = vunpack.c.h.b16 %v528
        %v1154 = vunpack.c.l.b16 %v529
        %v1155 = vunpack.c.h.b16 %v529
        %v1156 = vunpack.c.l.b16 %v530
        %v1157 = vunpack.c.h.b16 %v530
        %v1158 = vunpack.c.l.b16 %v531
        %v1159 = vunpack.c.h.b16 %v531
        %v1160 = vunpack.c.l.b16 %v532
        %v1161 = vunpack.c.h.b16 %v532
        %v1162 = vunpack.c.l.b16 %v533
        %v1163 = vunpack.c.h.b16 %v533
        %v1164 = vunpack.c.l.b16 %v534
        %v1165 = vunpack.c.h.b16 %v534
        %v1166 = vunpack.c.l.b16 %v535
        %v1167 = vunpack.c.h.b16 %v535
        %v1168 = vunpack.c.l.b16 %v536
        %v1169 = vunpack.c.h.b16 %v536
        %v1170 = vunpack.c.l.b16 %v537
        %v1171 = vunpack.c.h.b16 %v537
        %v1172 = vunpack.c.l.b16 %v538
        %v1173 = vunpack.c.h.b16 %v538
        %v1174 = vunpack.c.l.b16 %v539
        %v1175 = vunpack.c.h.b16 %v539
        %v1176 = vunpack.c.l.b16 %v540
        %v1177 = vunpack.c.h.b16 %v540
        %v1178 = vunpack.c.l.b16 %v541
        %v1179 = vunpack.c.h.b16 %v541
        %v1180 = vunpack.c.l.b16 %v542
        %v1181 = vunpack.c.h.b16 %v542
        %v1182 = vunpack.c.l.b16 %v543
        %v1183 = vunpack.c.h.b16 %v543
        %v1184 = vunpack.c.l.b16 %v544
        %v1185 = vunpack.c.h.b16 %v544
        %v1186 = vunpack.c.l.b16 %v545
        %v1187 = vunpack.c.h.b16 %v545
        %v1188 = vunpack.c.l.b16 %v546
        %v1189 = vunpack.c.h.b16 %v546
        %v1190 = vunpack.c.l.b16 %v547
        %v1191 = vunpack.c.h.b16 %v547
        %v1192 = vunpack.c.l.b16 %v548
        %v1193 = vunpack.c.h.b16 %v548
        %v1194 = vpack.c.b16 %v806, %v802
        %v1195 = vpack.c.b16 %v807, %v803
        %v1196 = vpack.c.b16 %v808, %v804
        %v1197 = vpack.c.b16 %v809, %v805
        %v1198 = vpack.c.b16 %v814, %v810
        %v1199 = vpack.c.b16 %v815, %v811
        %v1200 = vpack.c.b16 %v816, %v812
        %v1201 = vpack.c.b16 %v817, %v813
        %v1202 = vpack.c.b16 %v822, %v818
        %v1203 = vpack.c.b16 %v823, %v819
        %v1204 = vpack.c.b16 %v824, %v820
        %v1205 = vpack.c.b16 %v825, %v821
        %v1206 = vpack.c.b16 %v830, %v826
        %v1207 = vpack.c.b16 %v831, %v827
        %v1208 = vpack.c.b16 %v832, %v828
        %v1209 = vpack.c.b16 %v833, %v829
        %v1210 = vpack.c.b16 %v838, %v834
        %v1211 = vpack.c.b16 %v839, %v835
        %v1212 = vpack.c.b16 %v840, %v836
        %v1213 = vpack.c.b16 %v841, %v837
        %v1214 = vpack.c.b16 %v846, %v842
        %v1215 = vpack.c.b16 %v847, %v843
        %v1216 = vpack.c.b16 %v848, %v844
        %v1217 = vpack.c.b16 %v849, %v845
        %v1218 = vpack.c.b16 %v854, %v850
        %v1219 = vpack.c.b16 %v855, %v851
        %v1220 = vpack.c.b16 %v856, %v852
        %v1221 = vpack.c.b16 %v857, %v853
        %v1222 = vpack.c.b16 %v862, %v858
        %v1223 = vpack.c.b16 %v863, %v859
        %v1224 = vpack.c.b16 %v864, %v860
        %v1225 = vpack.c.b16 %v865, %v861
        %v1226 = vpack.c.b16 %v870, %v866
        %v1227 = vpack.c.b16 %v871, %v867
        %v1228 = vpack.c.b16 %v872, %v868
        %v1229 = vpack.c.b16 %v873, %v869
        %v1230 = vpack.c.b16 %v878, %v874
        %v1231 = vpack.c.b16 %v879, %v875
        %v1232 = vpack.c.b16 %v880, %v876
        %v1233 = vpack.c.b16 %v881, %v877
        %v1234 = vpack.c.b16 %v886, %v882
        %v1235 = vpack.c.b16 %v887, %v883
        %v1236 = vpack.c.b16 %v888, %v884
        %v1237 = vpack.c.b16 %v889, %v885
        %v1238 = vpack.c.b16 %v894, %v890
        %v1239 = vpack.c.b16 %v895, %v891
        %v1240 = vpack.c.b16 %v896, %v892
        %v1241 = vpack.c.b16 %v897, %v893
        %v1242 = vpack.c.b16 %v902, %v898
        %v1243 = vpack.c.b16 %v903, %v899
        %v1244 = vpack.c.b16 %v904, %v900
        %v1245 = vpack.c.b16 %v905, %v901
        %v1246 = vpack.c.b16 %v910, %v906
        %v1247 = vpack.c.b16 %v911, %v907
        %v1248 = vpack.c.b16 %v912, %v908
        %v1249 = vpack.c.b16 %v913, %v909
        %v1250 = vpack.c.b16 %v918, %v914
        %v1251 = vpack.c.b16 %v919, %v915
        %v1252 = vpack.c.b16 %v920, %v916
        %v1253 = vpack.c.b16 %v921, %v917
        %v1254 = vpack.c.b16 %v926, %v922
        %v1255 = vpack.c.b16 %v927, %v923
        %v1256 = vpack.c.b16 %v928, %v924
        %v1257 = vpack.c.b16 %v929, %v925
        %v1258 = vpack.c.b16 %v934, %v930
        %v1259 = vpack.c.b16 %v935, %v931
        %v1260 = vpack.c.b16 %v936, %v932
        %v1261 = vpack.c.b16 %v937, %v933
        %v1262 = vpack.c.b16 %v942, %v938
        %v1263 = vpack.c.b16 %v943, %v939
        %v1264 = vpack.c.b16 %v944, %v940
        %v1265 = vpack.c.b16 %v945, %v941
        %v1266 = vpack.c.b16 %v950, %v946
        %v1267 = vpack.c.b16 %v951, %v947
        %v1268 = vpack.c.b16 %v952, %v948
        %v1269 = vpack.c.b16 %v953, %v949
        %v1270 = vpack.c.b16 %v958, %v954
        %v1271 = vpack.c.b16 %v959, %v955
        %v1272 = vpack.c.b16 %v960, %v956
        %v1273 = vpack.c.b16 %v961, %v957
        %v1274 = vpack.c.b16 %v966, %v962
        %v1275 = vpack.c.b16 %v967, %v963
        %v1276 = vpack.c.b16 %v968, %v964
        %v1277 = vpack.c.b16 %v969, %v965
        %v1278 = vpack.c.b16 %v974, %v970
        %v1279 = vpack.c.b16 %v975, %v971
        %v1280 = vpack.c.b16 %v976, %v972
        %v1281 = vpack.c.b16 %v977, %v973
        %v1282 = vpack.c.b16 %v982, %v978
        %v1283 = vpack.c.b16 %v983, %v979
        %v1284 = vpack.c.b16 %v984, %v980
        %v1285 = vpack.c.b16 %v985, %v981
        %v1286 = vpack.c.b16 %v990, %v986
        %v1287 = vpack.c.b16 %v991, %v987
        %v1288 = vpack.c.b16 %v992, %v988
        %v1289 = vpack.c.b16 %v993, %v989
        %v1290 = vpack.c.b16 %v998, %v994
        %v1291 = vpack.c.b16 %v999, %v995
        %v1292 = vpack.c.b16 %v1000, %v996
        %v1293 = vpack.c.b16 %v1001, %v997
        %v1294 = vpack.c.b16 %v1006, %v1002
        %v1295 = vpack.c.b16 %v1007, %v1003
        %v1296 = vpack.c.b16 %v1008, %v1004
        %v1297 = vpack.c.b16 %v1009, %v1005
        %v1298 = vpack.c.b16 %v1014, %v1010
        %v1299 = vpack.c.b16 %v1015, %v1011
        %v1300 = vpack.c.b16 %v1016, %v1012
        %v1301 = vpack.c.b16 %v1017, %v1013
        %v1302 = vpack.c.b16 %v1022, %v1018
        %v1303 = vpack.c.b16 %v1023, %v1019
        %v1304 = vpack.c.b16 %v1024, %v1020
        %v1305 = vpack.c.b16 %v1025, %v1021
        %v1306 = vpack.c.b16 %v1030, %v1026
        %v1307 = vpack.c.b16 %v1031, %v1027
        %v1308 = vpack.c.b16 %v1032, %v1028
        %v1309 = vpack.c.b16 %v1033, %v1029
        %v1310 = vpack.c.b16 %v1038, %v1034
        %v1311 = vpack.c.b16 %v1039, %v1035
        %v1312 = vpack.c.b16 %v1040, %v1036
        %v1313 = vpack.c.b16 %v1041, %v1037
        %v1314 = vpack.c.b16 %v1046, %v1042
        %v1315 = vpack.c.b16 %v1047, %v1043
        %v1316 = vpack.c.b16 %v1048, %v1044
        %v1317 = vpack.c.b16 %v1049, %v1045
        %v1318 = vpack.c.b16 %v1054, %v1050
        %v1319 = vpack.c.b16 %v1055, %v1051
        %v1320 = vpack.c.b16 %v1056, %v1052
        %v1321 = vpack.c.b16 %v1057, %v1053
        %v1322 = vpack.c.b16 %v1062, %v1058
        %v1323 = vpack.c.b16 %v1063, %v1059
        %v1324 = vpack.c.b16 %v1064, %v1060
        %v1325 = vpack.c.b16 %v1065, %v1061
        %v1326 = vpack.c.b16 %v1070, %v1066
        %v1327 = vpack.c.b16 %v1071, %v1067
        %v1328 = vpack.c.b16 %v1072, %v1068
        %v1329 = vpack.c.b16 %v1073, %v1069
        %v1330 = vpack.c.b16 %v1078, %v1074
        %v1331 = vpack.c.b16 %v1079, %v1075
        %v1332 = vpack.c.b16 %v1080, %v1076
        %v1333 = vpack.c.b16 %v1081, %v1077
        %v1334 = vpack.c.b16 %v1086, %v1082
        %v1335 = vpack.c.b16 %v1087, %v1083
        %v1336 = vpack.c.b16 %v1088, %v1084
        %v1337 = vpack.c.b16 %v1089, %v1085
        %v1338 = vpack.c.b16 %v1094, %v1090
        %v1339 = vpack.c.b16 %v1095, %v1091
        %v1340 = vpack.c.b16 %v1096, %v1092
        %v1341 = vpack.c.b16 %v1097, %v1093
        %v1342 = vpack.c.b16 %v1102, %v1098
        %v1343 = vpack.c.b16 %v1103, %v1099
        %v1344 = vpack.c.b16 %v1104, %v1100
        %v1345 = vpack.c.b16 %v1105, %v1101
        %v1346 = vpack.c.b16 %v1110, %v1106
        %v1347 = vpack.c.b16 %v1111, %v1107
        %v1348 = vpack.c.b16 %v1112, %v1108
        %v1349 = vpack.c.b16 %v1113, %v1109
        %v1350 = vpack.c.b16 %v1118, %v1114
        %v1351 = vpack.c.b16 %v1119, %v1115
        %v1352 = vpack.c.b16 %v1120, %v1116
        %v1353 = vpack.c.b16 %v1121, %v1117
        %v1354 = vpack.c.b16 %v1126, %v1122
        %v1355 = vpack.c.b16 %v1127, %v1123
        %v1356 = vpack.c.b16 %v1128, %v1124
        %v1357 = vpack.c.b16 %v1129, %v1125
        %v1358 = vpack.c.b16 %v1134, %v1130
        %v1359 = vpack.c.b16 %v1135, %v1131
        %v1360 = vpack.c.b16 %v1136, %v1132
        %v1361 = vpack.c.b16 %v1137, %v1133
        %v1362 = vpack.c.b16 %v1142, %v1138
        %v1363 = vpack.c.b16 %v1143, %v1139
        %v1364 = vpack.c.b16 %v1144, %v1140
        %v1365 = vpack.c.b16 %v1145, %v1141
        %v1366 = vpack.c.b16 %v1150, %v1146
        %v1367 = vpack.c.b16 %v1151, %v1147
        %v1368 = vpack.c.b16 %v1152, %v1148
        %v1369 = vpack.c.b16 %v1153, %v1149
        %v1370 = vpack.c.b16 %v1158, %v1154
        %v1371 = vpack.c.b16 %v1159, %v1155
        %v1372 = vpack.c.b16 %v1160, %v1156
        %v1373 = vpack.c.b16 %v1161, %v1157
        %v1374 = vpack.c.b16 %v1166, %v1162
        %v1375 = vpack.c.b16 %v1167, %v1163
        %v1376 = vpack.c.b16 %v1168, %v1164
        %v1377 = vpack.c.b16 %v1169, %v1165
        %v1378 = vpack.c.b16 %v1174, %v1170
        %v1379 = vpack.c.b16 %v1175, %v1171
        %v1380 = vpack.c.b16 %v1176, %v1172
        %v1381 = vpack.c.b16 %v1177, %v1173
        %v1382 = vpack.c.b16 %v1182, %v1178
        %v1383 = vpack.c.b16 %v1183, %v1179
        %v1384 = vpack.c.b16 %v1184, %v1180
        %v1385 = vpack.c.b16 %v1185, %v1181
        %v1386 = vpack.c.b16 %v1190, %v1186
        %v1387 = vpack.c.b16 %v1191, %v1187
        %v1388 = vpack.c.b16 %v1192, %v1188
        %v1389 = vpack.c.b16 %v1193, %v1189
        %vm1586 = vcmask 130048
        %v1588 = vsel %vm1586, %v599, 0
        %1590 = vmatprep.subr.bf16.mxu0 %v1195
        %1591 = vmatpush1.bf16.msra.mxu0 %v1194
        %1592 = vmatprep.subr.bf16.mxu0 %v1199
        %1593 = vmatpush1.bf16.msra.mxu0 %v1198
        %1594 = vmatprep.subr.bf16.mxu0 %v1203
        %1595 = vmatpush1.bf16.msra.mxu0 %v1202
        %1596 = vmatprep.subr.bf16.mxu0 %v1207
        %1597 = vmatpush1.bf16.msra.mxu0 %v1206
        %1598 = vmatprep.subr.bf16.mxu0 %v1211
        %1599 = vmatpush1.bf16.msra.mxu0 %v1210
        %1600 = vmatprep.subr.bf16.mxu0 %v1215
        %1601 = vmatpush1.bf16.msra.mxu0 %v1214
        %1602 = vmatprep.subr.bf16.mxu0 %v1219
        %1603 = vmatpush1.bf16.msra.mxu0 %v1218
        %1604 = vmatprep.subr.bf16.mxu0 %v1223
        %1605 = vmatpush1.bf16.msra.mxu0 %v1222
        %1606 = vmatprep.subr.bf16.mxu0 %v1227
        %1607 = vmatpush1.bf16.msra.mxu0 %v1226
        %1608 = vmatprep.subr.bf16.mxu0 %v1231
        %1609 = vmatpush1.bf16.msra.mxu0 %v1230
        %1610 = vmatprep.subr.bf16.mxu0 %v1235
        %1611 = vmatpush1.bf16.msra.mxu0 %v1234
        %1612 = vmatprep.subr.bf16.mxu0 %v1239
        %1613 = vmatpush1.bf16.msra.mxu0 %v1238
        %1614 = vmatprep.subr.bf16.mxu0 %v1243
        %1615 = vmatpush1.bf16.msra.mxu0 %v1242
        %1616 = vmatprep.subr.bf16.mxu0 %v1247
        %1617 = vmatpush1.bf16.msra.mxu0 %v1246
        %1618 = vmatprep.subr.bf16.mxu0 %v1251
        %1619 = vmatpush1.bf16.msra.mxu0 %v1250
        %1620 = vmatprep.subr.bf16.mxu0 %v1255
        %1621 = vmatpush1.bf16.msra.mxu0 %v1254
        %1622 = vmatprep.mubr.bf16.mxu0 %v594
        %1623 = vmatmul.mubr.bf16.gmra.mrb[0].mxu0 %v593
        %v1624 = vpop.f32.mrb[0].mxu0
        %v1625 = vadd.f32 %v554, %v1624
        %v1626 = vpop.f32.mrb[0].mxu0
        %v1627 = vadd.f32 %v558, %v1626
        %v1628 = vpop.f32.mrb[0].mxu0
        %v1629 = vadd.f32 %v554, %v1628
        %v1630 = vpop.f32.mrb[0].mxu0
        %v1631 = vadd.f32 %v558, %v1630
        %1632 = vdwg.mxu0
        %1633 = vmatprep.subr.bf16.mxu0 %v1259
        %1634 = vmatpush1.bf16.msra.mxu0 %v1258
        %1635 = vmatprep.subr.bf16.mxu0 %v1263
        %1636 = vmatpush1.bf16.msra.mxu0 %v1262
        %1637 = vmatprep.subr.bf16.mxu0 %v1267
        %1638 = vmatpush1.bf16.msra.mxu0 %v1266
        %1639 = vmatprep.subr.bf16.mxu0 %v1271
        %1640 = vmatpush1.bf16.msra.mxu0 %v1270
        %1641 = vmatprep.subr.bf16.mxu0 %v1275
        %1642 = vmatpush1.bf16.msra.mxu0 %v1274
        %1643 = vmatprep.subr.bf16.mxu0 %v1279
        %1644 = vmatpush1.bf16.msra.mxu0 %v1278
        %1645 = vmatprep.subr.bf16.mxu0 %v1283
        %1646 = vmatpush1.bf16.msra.mxu0 %v1282
        %1647 = vmatprep.subr.bf16.mxu0 %v1287
        %1648 = vmatpush1.bf16.msra.mxu0 %v1286
        %1649 = vmatprep.subr.bf16.mxu0 %v1291
        %1650 = vmatpush1.bf16.msra.mxu0 %v1290
        %1651 = vmatprep.subr.bf16.mxu0 %v1295
        %1652 = vmatpush1.bf16.msra.mxu0 %v1294
        %1653 = vmatprep.subr.bf16.mxu0 %v1299
        %1654 = vmatpush1.bf16.msra.mxu0 %v1298
        %1655 = vmatprep.subr.bf16.mxu0 %v1303
        %1656 = vmatpush1.bf16.msra.mxu0 %v1302
        %1657 = vmatprep.subr.bf16.mxu0 %v1307
        %1658 = vmatpush1.bf16.msra.mxu0 %v1306
        %1659 = vmatprep.subr.bf16.mxu0 %v1311
        %1660 = vmatpush1.bf16.msra.mxu0 %v1310
        %1661 = vmatprep.subr.bf16.mxu0 %v1315
        %1662 = vmatpush1.bf16.msra.mxu0 %v1314
        %1663 = vmatprep.subr.bf16.mxu0 %v1319
        %1664 = vmatpush1.bf16.msra.mxu0 %v1318
        %1665 = vmatprep.mubr.bf16.mxu0 %v596
        %1666 = vmatmul.mubr.bf16.gmra.mrb[0].mxu0 %v595
        %v1667 = vpop.f32.mrb[0].mxu0
        %v1668 = vadd.f32 %v1625, %v1667
        %v1669 = vpop.f32.mrb[0].mxu0
        %v1670 = vadd.f32 %v1627, %v1669
        %v1671 = vpop.f32.mrb[0].mxu0
        %v1672 = vadd.f32 %v1629, %v1671
        %v1673 = vpop.f32.mrb[0].mxu0
        %v1674 = vadd.f32 %v1631, %v1673
        %1675 = vdwg.mxu0
        %1676 = vmatprep.subr.bf16.mxu0 %v1323
        %1677 = vmatpush1.bf16.msra.mxu0 %v1322
        %1678 = vmatprep.subr.bf16.mxu0 %v1327
        %1679 = vmatpush1.bf16.msra.mxu0 %v1326
        %1680 = vmatprep.subr.bf16.mxu0 %v1331
        %1681 = vmatpush1.bf16.msra.mxu0 %v1330
        %1682 = vmatprep.subr.bf16.mxu0 %v1335
        %1683 = vmatpush1.bf16.msra.mxu0 %v1334
        %1684 = vmatprep.subr.bf16.mxu0 %v1339
        %1685 = vmatpush1.bf16.msra.mxu0 %v1338
        %1686 = vmatprep.subr.bf16.mxu0 %v1343
        %1687 = vmatpush1.bf16.msra.mxu0 %v1342
        %1688 = vmatprep.subr.bf16.mxu0 %v1347
        %1689 = vmatpush1.bf16.msra.mxu0 %v1346
        %1690 = vmatprep.subr.bf16.mxu0 %v1351
        %1691 = vmatpush1.bf16.msra.mxu0 %v1350
        %1692 = vmatprep.subr.bf16.mxu0 %v1355
        %1693 = vmatpush1.bf16.msra.mxu0 %v1354
        %1694 = vmatprep.subr.bf16.mxu0 %v1359
        %1695 = vmatpush1.bf16.msra.mxu0 %v1358
        %1696 = vmatprep.subr.bf16.mxu0 %v1363
        %1697 = vmatpush1.bf16.msra.mxu0 %v1362
        %1698 = vmatprep.subr.bf16.mxu0 %v1367
        %1699 = vmatpush1.bf16.msra.mxu0 %v1366
        %1700 = vmatprep.subr.bf16.mxu0 %v1371
        %1701 = vmatpush1.bf16.msra.mxu0 %v1370
        %1702 = vmatprep.subr.bf16.mxu0 %v1375
        %1703 = vmatpush1.bf16.msra.mxu0 %v1374
        %1704 = vmatprep.subr.bf16.mxu0 %v1379
        %1705 = vmatpush1.bf16.msra.mxu0 %v1378
        %1706 = vmatprep.subr.bf16.mxu0 %v1383
        %1707 = vmatpush1.bf16.msra.mxu0 %v1382
        %1708 = vmatprep.mubr.bf16.mxu0 %v598
        %1709 = vmatmul.mubr.bf16.gmra.mrb[0].mxu0 %v597
        %v1710 = vpop.f32.mrb[0].mxu0
        %v1711 = vadd.f32 %v1668, %v1710
        %v1712 = vpop.f32.mrb[0].mxu0
        %v1713 = vadd.f32 %v1670, %v1712
        %v1714 = vpop.f32.mrb[0].mxu0
        %v1715 = vadd.f32 %v1672, %v1714
        %v1716 = vpop.f32.mrb[0].mxu0
        %v1717 = vadd.f32 %v1674, %v1716
        %1718 = vdwg.mxu0
        %1719 = vmatprep.subr.bf16.mxu0 %v1387
        %1720 = vmatpush1.bf16.msra.mxu0 %v1386
        %1721 = vmatprep.subr.bf16.mxu0 0
        %1722 = vmatpush1.bf16.msra.mxu0 0
        %1723 = vmatprep.subr.bf16.mxu0 0
        %1724 = vmatpush1.bf16.msra.mxu0 0
        %1725 = vmatprep.subr.bf16.mxu0 0
        %1726 = vmatpush1.bf16.msra.mxu0 0
        %1727 = vmatprep.subr.bf16.mxu0 0
        %1728 = vmatpush1.bf16.msra.mxu0 0
        %1729 = vmatprep.subr.bf16.mxu0 0
        %1730 = vmatpush1.bf16.msra.mxu0 0
        %1731 = vmatprep.subr.bf16.mxu0 0
        %1732 = vmatpush1.bf16.msra.mxu0 0
        %1733 = vmatprep.subr.bf16.mxu0 0
        %1734 = vmatpush1.bf16.msra.mxu0 0
        %1735 = vmatprep.subr.bf16.mxu0 0
        %1736 = vmatpush1.bf16.msra.mxu0 0
        %1737 = vmatprep.subr.bf16.mxu0 0
        %1738 = vmatpush1.bf16.msra.mxu0 0
        %1739 = vmatprep.subr.bf16.mxu0 0
        %1740 = vmatpush1.bf16.msra.mxu0 0
        %1741 = vmatprep.subr.bf16.mxu0 0
        %1742 = vmatpush1.bf16.msra.mxu0 0
        %1743 = vmatprep.subr.bf16.mxu0 0
        %1744 = vmatpush1.bf16.msra.mxu0 0
        %1745 = vmatprep.subr.bf16.mxu0 0
        %1746 = vmatpush1.bf16.msra.mxu0 0
        %1747 = vmatprep.subr.bf16.mxu0 0
        %1748 = vmatpush1.bf16.msra.mxu0 0
        %1749 = vmatprep.subr.bf16.mxu0 0
        %1750 = vmatpush1.bf16.msra.mxu0 0
        %1751 = vmatprep.mubr.bf16.mxu0 0
        %1752 = vmatmul.mubr.bf16.gmra.mrb[0].mxu0 %v1588
        %v1753 = vpop.f32.mrb[0].mxu0
        %v1754 = vadd.f32 %v1711, %v1753
        %v1755 = vpop.f32.mrb[0].mxu0
        %v1756 = vadd.f32 %v1713, %v1755
        %v1757 = vpop.f32.mrb[0].mxu0
        %v1758 = vadd.f32 %v1715, %v1757
        %v1759 = vpop.f32.mrb[0].mxu0
        %v1760 = vadd.f32 %v1717, %v1759
        %1761 = vdwg.mxu0
        %1762 = vmatprep.subr.bf16.mxu0 %v1197
        %1763 = vmatpush1.bf16.msra.mxu0 %v1196
        %1764 = vmatprep.subr.bf16.mxu0 %v1201
        %1765 = vmatpush1.bf16.msra.mxu0 %v1200
        %1766 = vmatprep.subr.bf16.mxu0 %v1205
        %1767 = vmatpush1.bf16.msra.mxu0 %v1204
        %1768 = vmatprep.subr.bf16.mxu0 %v1209
        %1769 = vmatpush1.bf16.msra.mxu0 %v1208
        %1770 = vmatprep.subr.bf16.mxu0 %v1213
        %1771 = vmatpush1.bf16.msra.mxu0 %v1212
        %1772 = vmatprep.subr.bf16.mxu0 %v1217
        %1773 = vmatpush1.bf16.msra.mxu0 %v1216
        %1774 = vmatprep.subr.bf16.mxu0 %v1221
        %1775 = vmatpush1.bf16.msra.mxu0 %v1220
        %1776 = vmatprep.subr.bf16.mxu0 %v1225
        %1777 = vmatpush1.bf16.msra.mxu0 %v1224
        %1778 = vmatprep.subr.bf16.mxu0 %v1229
        %1779 = vmatpush1.bf16.msra.mxu0 %v1228
        %1780 = vmatprep.subr.bf16.mxu0 %v1233
        %1781 = vmatpush1.bf16.msra.mxu0 %v1232
        %1782 = vmatprep.subr.bf16.mxu0 %v1237
        %1783 = vmatpush1.bf16.msra.mxu0 %v1236
        %1784 = vmatprep.subr.bf16.mxu0 %v1241
        %1785 = vmatpush1.bf16.msra.mxu0 %v1240
        %1786 = vmatprep.subr.bf16.mxu0 %v1245
        %1787 = vmatpush1.bf16.msra.mxu0 %v1244
        %1788 = vmatprep.subr.bf16.mxu0 %v1249
        %1789 = vmatpush1.bf16.msra.mxu0 %v1248
        %1790 = vmatprep.subr.bf16.mxu0 %v1253
        %1791 = vmatpush1.bf16.msra.mxu0 %v1252
        %1792 = vmatprep.subr.bf16.mxu0 %v1257
        %1793 = vmatpush1.bf16.msra.mxu0 %v1256
        %1794 = vmatprep.mubr.bf16.mxu0 %v594
        %1795 = vmatmul.mubr.bf16.gmra.mrb[0].mxu0 %v593
        %v1796 = vpop.f32.mrb[0].mxu0
        %v1797 = vadd.f32 %v562, %v1796
        %v1798 = vpop.f32.mrb[0].mxu0
        %v1799 = vadd.f32 %v566, %v1798
        %v1800 = vpop.f32.mrb[0].mxu0
        %v1801 = vadd.f32 %v562, %v1800
        %v1802 = vpop.f32.mrb[0].mxu0
        %v1803 = vadd.f32 %v566, %v1802
        %1804 = vdwg.mxu0
        %1805 = vmatprep.subr.bf16.mxu0 %v1261
        %1806 = vmatpush1.bf16.msra.mxu0 %v1260
        %1807 = vmatprep.subr.bf16.mxu0 %v1265
        %1808 = vmatpush1.bf16.msra.mxu0 %v1264
        %1809 = vmatprep.subr.bf16.mxu0 %v1269
        %1810 = vmatpush1.bf16.msra.mxu0 %v1268
        %1811 = vmatprep.subr.bf16.mxu0 %v1273
        %1812 = vmatpush1.bf16.msra.mxu0 %v1272
        %1813 = vmatprep.subr.bf16.mxu0 %v1277
        %1814 = vmatpush1.bf16.msra.mxu0 %v1276
        %1815 = vmatprep.subr.bf16.mxu0 %v1281
        %1816 = vmatpush1.bf16.msra.mxu0 %v1280
        %1817 = vmatprep.subr.bf16.mxu0 %v1285
        %1818 = vmatpush1.bf16.msra.mxu0 %v1284
        %1819 = vmatprep.subr.bf16.mxu0 %v1289
        %1820 = vmatpush1.bf16.msra.mxu0 %v1288
        %1821 = vmatprep.subr.bf16.mxu0 %v1293
        %1822 = vmatpush1.bf16.msra.mxu0 %v1292
        %1823 = vmatprep.subr.bf16.mxu0 %v1297
        %1824 = vmatpush1.bf16.msra.mxu0 %v1296
        %1825 = vmatprep.subr.bf16.mxu0 %v1301
        %1826 = vmatpush1.bf16.msra.mxu0 %v1300
        %1827 = vmatprep.subr.bf16.mxu0 %v1305
        %1828 = vmatpush1.bf16.msra.mxu0 %v1304
        %1829 = vmatprep.subr.bf16.mxu0 %v1309
        %1830 = vmatpush1.bf16.msra.mxu0 %v1308
        %1831 = vmatprep.subr.bf16.mxu0 %v1313
        %1832 = vmatpush1.bf16.msra.mxu0 %v1312
        %1833 = vmatprep.subr.bf16.mxu0 %v1317
        %1834 = vmatpush1.bf16.msra.mxu0 %v1316
        %1835 = vmatprep.subr.bf16.mxu0 %v1321
        %1836 = vmatpush1.bf16.msra.mxu0 %v1320
        %1837 = vmatprep.mubr.bf16.mxu0 %v596
        %1838 = vmatmul.mubr.bf16.gmra.mrb[0].mxu0 %v595
        %v1839 = vpop.f32.mrb[0].mxu0
        %v1840 = vadd.f32 %v1797, %v1839
        %v1841 = vpop.f32.mrb[0].mxu0
        %v1842 = vadd.f32 %v1799, %v1841
        %v1843 = vpop.f32.mrb[0].mxu0
        %v1844 = vadd.f32 %v1801, %v1843
        %v1845 = vpop.f32.mrb[0].mxu0
        %v1846 = vadd.f32 %v1803, %v1845
        %1847 = vdwg.mxu0
        %1848 = vmatprep.subr.bf16.mxu0 %v1325
        %1849 = vmatpush1.bf16.msra.mxu0 %v1324
        %1850 = vmatprep.subr.bf16.mxu0 %v1329
        %1851 = vmatpush1.bf16.msra.mxu0 %v1328
        %1852 = vmatprep.subr.bf16.mxu0 %v1333
        %1853 = vmatpush1.bf16.msra.mxu0 %v1332
        %1854 = vmatprep.subr.bf16.mxu0 %v1337
        %1855 = vmatpush1.bf16.msra.mxu0 %v1336
        %1856 = vmatprep.subr.bf16.mxu0 %v1341
        %1857 = vmatpush1.bf16.msra.mxu0 %v1340
        %1858 = vmatprep.subr.bf16.mxu0 %v1345
        %1859 = vmatpush1.bf16.msra.mxu0 %v1344
        %1860 = vmatprep.subr.bf16.mxu0 %v1349
        %1861 = vmatpush1.bf16.msra.mxu0 %v1348
        %1862 = vmatprep.subr.bf16.mxu0 %v1353
        %1863 = vmatpush1.bf16.msra.mxu0 %v1352
        %1864 = vmatprep.subr.bf16.mxu0 %v1357
        %1865 = vmatpush1.bf16.msra.mxu0 %v1356
        %1866 = vmatprep.subr.bf16.mxu0 %v1361
        %1867 = vmatpush1.bf16.msra.mxu0 %v1360
        %1868 = vmatprep.subr.bf16.mxu0 %v1365
        %1869 = vmatpush1.bf16.msra.mxu0 %v1364
        %1870 = vmatprep.subr.bf16.mxu0 %v1369
        %1871 = vmatpush1.bf16.msra.mxu0 %v1368
        %1872 = vmatprep.subr.bf16.mxu0 %v1373
        %1873 = vmatpush1.bf16.msra.mxu0 %v1372
        %1874 = vmatprep.subr.bf16.mxu0 %v1377
        %1875 = vmatpush1.bf16.msra.mxu0 %v1376
        %1876 = vmatprep.subr.bf16.mxu0 %v1381
        %1877 = vmatpush1.bf16.msra.mxu0 %v1380
        %1878 = vmatprep.subr.bf16.mxu0 %v1385
        %1879 = vmatpush1.bf16.msra.mxu0 %v1384
        %1880 = vmatprep.mubr.bf16.mxu0 %v598
        %1881 = vmatmul.mubr.bf16.gmra.mrb[0].mxu0 %v597
        %v1882 = vpop.f32.mrb[0].mxu0
        %v1883 = vadd.f32 %v1840, %v1882
        %v1884 = vpop.f32.mrb[0].mxu0
        %v1885 = vadd.f32 %v1842, %v1884
        %v1886 = vpop.f32.mrb[0].mxu0
        %v1887 = vadd.f32 %v1844, %v1886
        %v1888 = vpop.f32.mrb[0].mxu0
        %v1889 = vadd.f32 %v1846, %v1888
        %1890 = vdwg.mxu0
        %1891 = vmatprep.subr.bf16.mxu0 %v1389
        %1892 = vmatpush1.bf16.msra.mxu0 %v1388
        %1893 = vmatprep.subr.bf16.mxu0 0
        %1894 = vmatpush1.bf16.msra.mxu0 0
        %1895 = vmatprep.subr.bf16.mxu0 0
        %1896 = vmatpush1.bf16.msra.mxu0 0
        %1897 = vmatprep.subr.bf16.mxu0 0
        %1898 = vmatpush1.bf16.msra.mxu0 0
        %1899 = vmatprep.subr.bf16.mxu0 0
        %1900 = vmatpush1.bf16.msra.mxu0 0
        %1901 = vmatprep.subr.bf16.mxu0 0
        %1902 = vmatpush1.bf16.msra.mxu0 0
        %1903 = vmatprep.subr.bf16.mxu0 0
        %1904 = vmatpush1.bf16.msra.mxu0 0
        %1905 = vmatprep.subr.bf16.mxu0 0
        %1906 = vmatpush1.bf16.msra.mxu0 0
        %1907 = vmatprep.subr.bf16.mxu0 0
        %1908 = vmatpush1.bf16.msra.mxu0 0
        %1909 = vmatprep.subr.bf16.mxu0 0
        %1910 = vmatpush1.bf16.msra.mxu0 0
        %1911 = vmatprep.subr.bf16.mxu0 0
        %1912 = vmatpush1.bf16.msra.mxu0 0
        %1913 = vmatprep.subr.bf16.mxu0 0
        %1914 = vmatpush1.bf16.msra.mxu0 0
        %1915 = vmatprep.subr.bf16.mxu0 0
        %1916 = vmatpush1.bf16.msra.mxu0 0
        %1917 = vmatprep.subr.bf16.mxu0 0
        %1918 = vmatpush1.bf16.msra.mxu0 0
        %1919 = vmatprep.subr.bf16.mxu0 0
        %1920 = vmatpush1.bf16.msra.mxu0 0
        %1921 = vmatprep.subr.bf16.mxu0 0
        %1922 = vmatpush1.bf16.msra.mxu0 0
        %1923 = vmatprep.mubr.bf16.mxu0 0
        %1924 = vmatmul.mubr.bf16.gmra.mrb[0].mxu0 %v1588
        %v1925 = vpop.f32.mrb[0].mxu0
        %v1926 = vadd.f32 %v1883, %v1925
        %v1927 = vpop.f32.mrb[0].mxu0
        %v1928 = vadd.f32 %v1885, %v1927
        %v1929 = vpop.f32.mrb[0].mxu0
        %v1930 = vadd.f32 %v1887, %v1929
        %v1931 = vpop.f32.mrb[0].mxu0
        %v1932 = vadd.f32 %v1889, %v1931
        %1933 = vdwg.mxu0
        %v1934 = vmax.f32 %v1754, 0.0
        %v1935 = vmax.f32 %v1756, 0.0
        %v1936 = vmax.f32 %v1926, 0.0
        %v1937 = vmax.f32 %v1928, 0.0
        %v1938 = vmax.f32 %v1758, 0.0
        %v1939 = vmax.f32 %v1760, 0.0
        %v1940 = vmax.f32 %v1930, 0.0
        %v1941 = vmax.f32 %v1932, 0.0
        %v1942 = vpack.c.bf16 %v1938, %v1934
        %v1943 = vpack.c.bf16 %v1939, %v1935
        %v1944 = vpack.c.bf16 %v1940, %v1936
        %v1945 = vpack.c.bf16 %v1941, %v1937
        %v1946 = vld [vmem:[#allocation7] sm:$0xf]
        %v1947 = vld [vmem:[#allocation7 + $0x4] sm:$0xf]
        %v1948 = vld [vmem:[#allocation7 + $0x8] sm:$0xf]
        %v1949 = vld [vmem:[#allocation7 + $0xc] sm:$0xf]
        %v1950 = vld [vmem:[#allocation7 + $0x10] sm:$0xf]
        %v1951 = vld [vmem:[#allocation7 + $0x14] sm:$0xf]
        %v1952 = vld [vmem:[#allocation7 + $0x18] sm:$0xf]
        %v1953 = vld [vmem:[#allocation7 + $0x1c] sm:$0xf]
        %v1954 = vld [vmem:[#allocation7 + $0x20] sm:$0xf]
        %v1955 = vld [vmem:[#allocation7 + $0x24] sm:$0xf]
        %v1956 = vld [vmem:[#allocation7 + $0x28] sm:$0xf]
        %v1957 = vld [vmem:[#allocation7 + $0x2c] sm:$0xf]
        %v1958 = vld [vmem:[#allocation7 + $0x30] sm:$0xf]
        %v1959 = vld [vmem:[#allocation7 + $0x34] sm:$0xf]
        %v1960 = vld [vmem:[#allocation7 + $0x38] sm:$0xf]
        %v1961 = vld [vmem:[#allocation7 + $0x3c] sm:$0xf]
        %v1962 = vld [vmem:[#allocation7 + $0x40] sm:$0xf]
        %v1963 = vld [vmem:[#allocation7 + $0x44] sm:$0xf]
        %v1964 = vld [vmem:[#allocation7 + $0x48] sm:$0xf]
        %v1965 = vld [vmem:[#allocation7 + $0x4c] sm:$0xf]
        %v1966 = vld [vmem:[#allocation7 + $0x50] sm:$0xf]
        %v1967 = vld [vmem:[#allocation7 + $0x54] sm:$0xf]
        %v1968 = vld [vmem:[#allocation7 + $0x58] sm:$0xf]
        %v1969 = vld [vmem:[#allocation7 + $0x5c] sm:$0xf]
        %v1970 = vld [vmem:[#allocation7 + $0x60] sm:$0xf]
        %v1971 = vld [vmem:[#allocation7 + $0x64] sm:$0xf]
        %v1972 = vld [vmem:[#allocation7 + $0x68] sm:$0xf]
        %v1973 = vld [vmem:[#allocation7 + $0x6c] sm:$0xf]
        %v1974 = vld [vmem:[#allocation7 + $0x70] sm:$0xf]
        %v1975 = vld [vmem:[#allocation7 + $0x74] sm:$0xf]
        %v1976 = vld [vmem:[#allocation7 + $0x78] sm:$0xf]
        %v1977 = vld [vmem:[#allocation7 + $0x7c] sm:$0xf]
        %v1978 = vld [vmem:[#allocation7 + $0x80] sm:$0xf]
        %v1979 = vld [vmem:[#allocation7 + $0x84] sm:$0xf]
        %v1980 = vld [vmem:[#allocation7 + $0x88] sm:$0xf]
        %v1981 = vld [vmem:[#allocation7 + $0x8c] sm:$0xf]
        %v1982 = vld [vmem:[#allocation7 + $0x90] sm:$0xf]
        %v1983 = vld [vmem:[#allocation7 + $0x94] sm:$0xf]
        %v1984 = vld [vmem:[#allocation7 + $0x98] sm:$0xf]
        %v1985 = vld [vmem:[#allocation7 + $0x9c] sm:$0xf]
        %v1986 = vld [vmem:[#allocation7 + $0xa0] sm:$0xf]
        %v1987 = vld [vmem:[#allocation7 + $0xa4] sm:$0xf]
        %v1988 = vld [vmem:[#allocation7 + $0xa8] sm:$0xf]
        %v1989 = vld [vmem:[#allocation7 + $0xac] sm:$0xf]
        %v1990 = vld [vmem:[#allocation7 + $0xb0] sm:$0xf]
        %v1991 = vld [vmem:[#allocation7 + $0xb4] sm:$0xf]
        %v1992 = vld [vmem:[#allocation7 + $0xb8] sm:$0xf]
        %v1993 = vld [vmem:[#allocation7 + $0xbc] sm:$0xf]
        %v1994 = vld [vmem:[#allocation7 + $0xc0] sm:$0xf]
        %v1995 = vld [vmem:[#allocation7 + $0xc4] sm:$0xf]
        %v1996 = vld [vmem:[#allocation7 + $0xc8] sm:$0xf]
        %v1997 = vld [vmem:[#allocation7 + $0xcc] sm:$0xf]
        %v1998 = vld [vmem:[#allocation7 + $0xd0] sm:$0xf]
        %v1999 = vld [vmem:[#allocation7 + $0xd4] sm:$0xf]
        %v2000 = vld [vmem:[#allocation7 + $0xd8] sm:$0xf]
        %v2001 = vld [vmem:[#allocation7 + $0xdc] sm:$0xf]
        %v2002 = vld [vmem:[#allocation7 + $0xe0] sm:$0xf]
        %v2003 = vld [vmem:[#allocation7 + $0xe4] sm:$0xf]
        %v2004 = vld [vmem:[#allocation7 + $0xe8] sm:$0xf]
        %v2005 = vld [vmem:[#allocation7 + $0xec] sm:$0xf]
        %v2006 = vld [vmem:[#allocation7 + $0xf0] sm:$0xf]
        %v2007 = vld [vmem:[#allocation7 + $0xf4] sm:$0xf]
        %v2008 = vld [vmem:[#allocation7 + $0xf8] sm:$0xf]
        %v2009 = vld [vmem:[#allocation7 + $0xfc] sm:$0xf]
        %v2010 = vld [vmem:[%s4] sm:$0x1]
        %v2012 = vlaneseq
        %v2013 = vshrl.u32 %v2012, 7
        %v2014 = vsub.s32 0, %v2013
        %v2015 = vrot.slane %v2010, %v2014
        %v2081 = vunpack.c.l.b16 %v1946
        %v2082 = vunpack.c.l.b16 %v1947
        %v2083 = vunpack.c.l.b16 %v1948
        %v2084 = vunpack.c.l.b16 %v1949
        %v2085 = vunpack.c.l.b16 %v1950
        %v2086 = vunpack.c.l.b16 %v1951
        %v2087 = vunpack.c.l.b16 %v1952
        %v2088 = vunpack.c.l.b16 %v1953
        %v2089 = vunpack.c.l.b16 %v1954
        %v2090 = vunpack.c.l.b16 %v1955
        %v2091 = vunpack.c.l.b16 %v1956
        %v2092 = vunpack.c.l.b16 %v1957
        %v2093 = vunpack.c.l.b16 %v1958
        %v2094 = vunpack.c.l.b16 %v1959
        %v2095 = vunpack.c.l.b16 %v1960
        %v2096 = vunpack.c.l.b16 %v1961
        %v2097 = vunpack.c.l.b16 %v1962
        %v2098 = vunpack.c.l.b16 %v1963
        %v2099 = vunpack.c.l.b16 %v1964
        %v2100 = vunpack.c.l.b16 %v1965
        %v2101 = vunpack.c.l.b16 %v1966
        %v2102 = vunpack.c.l.b16 %v1967
        %v2103 = vunpack.c.l.b16 %v1968
        %v2104 = vunpack.c.l.b16 %v1969
        %v2105 = vunpack.c.l.b16 %v1970
        %v2106 = vunpack.c.l.b16 %v1971
        %v2107 = vunpack.c.l.b16 %v1972
        %v2108 = vunpack.c.l.b16 %v1973
        %v2109 = vunpack.c.l.b16 %v1974
        %v2110 = vunpack.c.l.b16 %v1975
        %v2111 = vunpack.c.l.b16 %v1976
        %v2112 = vunpack.c.l.b16 %v1977
        %v2113 = vunpack.c.l.b16 %v1978
        %v2114 = vunpack.c.l.b16 %v1979
        %v2115 = vunpack.c.l.b16 %v1980
        %v2116 = vunpack.c.l.b16 %v1981
        %v2117 = vunpack.c.l.b16 %v1982
        %v2118 = vunpack.c.l.b16 %v1983
        %v2119 = vunpack.c.l.b16 %v1984
        %v2120 = vunpack.c.l.b16 %v1985
        %v2121 = vunpack.c.l.b16 %v1986
        %v2122 = vunpack.c.l.b16 %v1987
        %v2123 = vunpack.c.l.b16 %v1988
        %v2124 = vunpack.c.l.b16 %v1989
        %v2125 = vunpack.c.l.b16 %v1990
        %v2126 = vunpack.c.l.b16 %v1991
        %v2127 = vunpack.c.l.b16 %v1992
        %v2128 = vunpack.c.l.b16 %v1993
        %v2129 = vunpack.c.l.b16 %v1994
        %v2130 = vunpack.c.l.b16 %v1995
        %v2131 = vunpack.c.l.b16 %v1996
        %v2132 = vunpack.c.l.b16 %v1997
        %v2133 = vunpack.c.l.b16 %v1998
        %v2134 = vunpack.c.l.b16 %v1999
        %v2135 = vunpack.c.l.b16 %v2000
        %v2136 = vunpack.c.l.b16 %v2001
        %v2137 = vunpack.c.l.b16 %v2002
        %v2138 = vunpack.c.l.b16 %v2003
        %v2139 = vunpack.c.l.b16 %v2004
        %v2140 = vunpack.c.l.b16 %v2005
        %v2141 = vunpack.c.l.b16 %v2006
        %v2142 = vunpack.c.l.b16 %v2007
        %v2143 = vunpack.c.l.b16 %v2008
        %v2144 = vunpack.c.l.b16 %v2009
        %v2145 = vpack.c.b16 %v2082, %v2081
        %v2146 = vpack.c.b16 %v2084, %v2083
        %v2147 = vpack.c.b16 %v2086, %v2085
        %v2148 = vpack.c.b16 %v2088, %v2087
        %v2149 = vpack.c.b16 %v2090, %v2089
        %v2150 = vpack.c.b16 %v2092, %v2091
        %v2151 = vpack.c.b16 %v2094, %v2093
        %v2152 = vpack.c.b16 %v2096, %v2095
        %v2153 = vpack.c.b16 %v2098, %v2097
        %v2154 = vpack.c.b16 %v2100, %v2099
        %v2155 = vpack.c.b16 %v2102, %v2101
        %v2156 = vpack.c.b16 %v2104, %v2103
        %v2157 = vpack.c.b16 %v2106, %v2105
        %v2158 = vpack.c.b16 %v2108, %v2107
        %v2159 = vpack.c.b16 %v2110, %v2109
        %v2160 = vpack.c.b16 %v2112, %v2111
        %v2161 = vpack.c.b16 %v2114, %v2113
        %v2162 = vpack.c.b16 %v2116, %v2115
        %v2163 = vpack.c.b16 %v2118, %v2117
        %v2164 = vpack.c.b16 %v2120, %v2119
        %v2165 = vpack.c.b16 %v2122, %v2121
        %v2166 = vpack.c.b16 %v2124, %v2123
        %v2167 = vpack.c.b16 %v2126, %v2125
        %v2168 = vpack.c.b16 %v2128, %v2127
        %v2169 = vpack.c.b16 %v2130, %v2129
        %v2170 = vpack.c.b16 %v2132, %v2131
        %v2171 = vpack.c.b16 %v2134, %v2133
        %v2172 = vpack.c.b16 %v2136, %v2135
        %v2173 = vpack.c.b16 %v2138, %v2137
        %v2174 = vpack.c.b16 %v2140, %v2139
        %v2175 = vpack.c.b16 %v2142, %v2141
        %v2176 = vpack.c.b16 %v2144, %v2143
        %2209 = vmatprep.subr.bf16.mxu0 0
        %2210 = vmatpush1.bf16.msra.mxu0 %v2145
        %2211 = vmatprep.subr.bf16.mxu0 0
        %2212 = vmatpush1.bf16.msra.mxu0 %v2146
        %2213 = vmatprep.subr.bf16.mxu0 0
        %2214 = vmatpush1.bf16.msra.mxu0 %v2147
        %2215 = vmatprep.subr.bf16.mxu0 0
        %2216 = vmatpush1.bf16.msra.mxu0 %v2148
        %2217 = vmatprep.subr.bf16.mxu0 0
        %2218 = vmatpush1.bf16.msra.mxu0 %v2149
        %2219 = vmatprep.subr.bf16.mxu0 0
        %2220 = vmatpush1.bf16.msra.mxu0 %v2150
        %2221 = vmatprep.subr.bf16.mxu0 0
        %2222 = vmatpush1.bf16.msra.mxu0 %v2151
        %2223 = vmatprep.subr.bf16.mxu0 0
        %2224 = vmatpush1.bf16.msra.mxu0 %v2152
        %2225 = vmatprep.subr.bf16.mxu0 0
        %2226 = vmatpush1.bf16.msra.mxu0 %v2153
        %2227 = vmatprep.subr.bf16.mxu0 0
        %2228 = vmatpush1.bf16.msra.mxu0 %v2154
        %2229 = vmatprep.subr.bf16.mxu0 0
        %2230 = vmatpush1.bf16.msra.mxu0 %v2155
        %2231 = vmatprep.subr.bf16.mxu0 0
        %2232 = vmatpush1.bf16.msra.mxu0 %v2156
        %2233 = vmatprep.subr.bf16.mxu0 0
        %2234 = vmatpush1.bf16.msra.mxu0 %v2157
        %2235 = vmatprep.subr.bf16.mxu0 0
        %2236 = vmatpush1.bf16.msra.mxu0 %v2158
        %2237 = vmatprep.subr.bf16.mxu0 0
        %2238 = vmatpush1.bf16.msra.mxu0 %v2159
        %2239 = vmatprep.subr.bf16.mxu0 0
        %2240 = vmatpush1.bf16.msra.mxu0 %v2160
        %2241 = vmatprep.mubr.bf16.mxu0 %v1943
        %2242 = vmatmul.mubr.bf16.gmra.mrb[0].mxu0 %v1942
        %v2243 = vpop.f32.mrb[0].mxu0
        %v2244 = vadd.f32 %v2015, %v2243
        %v2245 = vpop.f32.mrb[0].mxu0
        %v2246 = vpop.f32.mrb[0].mxu0
        %v2247 = vadd.f32 %v2015, %v2246
        %v2248 = vpop.f32.mrb[0].mxu0
        %2249 = vdwg.mxu0
        %2250 = vmatprep.subr.bf16.mxu0 0
        %2251 = vmatpush1.bf16.msra.mxu0 %v2161
        %2252 = vmatprep.subr.bf16.mxu0 0
        %2253 = vmatpush1.bf16.msra.mxu0 %v2162
        %2254 = vmatprep.subr.bf16.mxu0 0
        %2255 = vmatpush1.bf16.msra.mxu0 %v2163
        %2256 = vmatprep.subr.bf16.mxu0 0
        %2257 = vmatpush1.bf16.msra.mxu0 %v2164
        %2258 = vmatprep.subr.bf16.mxu0 0
        %2259 = vmatpush1.bf16.msra.mxu0 %v2165
        %2260 = vmatprep.subr.bf16.mxu0 0
        %2261 = vmatpush1.bf16.msra.mxu0 %v2166
        %2262 = vmatprep.subr.bf16.mxu0 0
        %2263 = vmatpush1.bf16.msra.mxu0 %v2167
        %2264 = vmatprep.subr.bf16.mxu0 0
        %2265 = vmatpush1.bf16.msra.mxu0 %v2168
        %2266 = vmatprep.subr.bf16.mxu0 0
        %2267 = vmatpush1.bf16.msra.mxu0 %v2169
        %2268 = vmatprep.subr.bf16.mxu0 0
        %2269 = vmatpush1.bf16.msra.mxu0 %v2170
        %2270 = vmatprep.subr.bf16.mxu0 0
        %2271 = vmatpush1.bf16.msra.mxu0 %v2171
        %2272 = vmatprep.subr.bf16.mxu0 0
        %2273 = vmatpush1.bf16.msra.mxu0 %v2172
        %2274 = vmatprep.subr.bf16.mxu0 0
        %2275 = vmatpush1.bf16.msra.mxu0 %v2173
        %2276 = vmatprep.subr.bf16.mxu0 0
        %2277 = vmatpush1.bf16.msra.mxu0 %v2174
        %2278 = vmatprep.subr.bf16.mxu0 0
        %2279 = vmatpush1.bf16.msra.mxu0 %v2175
        %2280 = vmatprep.subr.bf16.mxu0 0
        %2281 = vmatpush1.bf16.msra.mxu0 %v2176
        %2282 = vmatprep.mubr.bf16.mxu0 %v1945
        %2283 = vmatmul.mubr.bf16.gmra.mrb[0].mxu0 %v1944
        %v2284 = vpop.f32.mrb[0].mxu0
        %v2285 = vadd.f32 %v2244, %v2284
        %v2286 = vpop.f32.mrb[0].mxu0
        %v2287 = vpop.f32.mrb[0].mxu0
        %v2288 = vadd.f32 %v2247, %v2287
        %v2289 = vpop.f32.mrb[0].mxu0
        %2290 = vdwg.mxu0
        %v2291 = vmax.f32 %v2285, 0.0
        %v2292 = vmax.f32 %v2288, 0.0
        %v2293 = vpack.c.bf16 %v2292, %v2291
        %v2294 = vld [vmem:[#allocation8] sm:$0xf]
        %v2295 = vld [vmem:[#allocation8 + $0x4] sm:$0xf]
        %v2296 = vld [vmem:[#allocation8 + $0x8] sm:$0xf]
        %v2297 = vld [vmem:[#allocation8 + $0xc] sm:$0xf]
        %v2298 = vld [vmem:[#allocation8 + $0x10] sm:$0xf]
        %v2299 = vld [vmem:[#allocation8 + $0x14] sm:$0xf]
        %v2300 = vld [vmem:[#allocation8 + $0x18] sm:$0xf]
        %v2301 = vld [vmem:[#allocation8 + $0x1c] sm:$0xf]
        %v2302 = vld [vmem:[#allocation8 + $0x20] sm:$0xf]
        %v2303 = vld [vmem:[#allocation8 + $0x24] sm:$0xf]
        %v2304 = vld [vmem:[#allocation8 + $0x28] sm:$0xf]
        %v2305 = vld [vmem:[#allocation8 + $0x2c] sm:$0xf]
        %v2306 = vld [vmem:[#allocation8 + $0x30] sm:$0xf]
        %v2307 = vld [vmem:[#allocation8 + $0x34] sm:$0xf]
        %v2308 = vld [vmem:[#allocation8 + $0x38] sm:$0xf]
        %v2309 = vld [vmem:[#allocation8 + $0x3c] sm:$0xf]
        %v2310 = vld [vmem:[%s6] sm:$0x1]
        %v2312 = vlaneseq
        %v2313 = vshrl.u32 %v2312, 7
        %v2314 = vsub.s32 0, %v2313
        %v2315 = vrot.slane %v2310, %v2314
        %v2333 = vunpack.c.l.b16 %v2294
        %v2334 = vunpack.c.l.b16 %v2295
        %v2335 = vunpack.c.l.b16 %v2296
        %v2336 = vunpack.c.l.b16 %v2297
        %v2337 = vunpack.c.l.b16 %v2298
        %v2338 = vunpack.c.l.b16 %v2299
        %v2339 = vunpack.c.l.b16 %v2300
        %v2340 = vunpack.c.l.b16 %v2301
        %v2341 = vunpack.c.l.b16 %v2302
        %v2342 = vunpack.c.l.b16 %v2303
        %v2343 = vunpack.c.l.b16 %v2304
        %v2344 = vunpack.c.l.b16 %v2305
        %v2345 = vunpack.c.l.b16 %v2306
        %v2346 = vunpack.c.l.b16 %v2307
        %v2347 = vunpack.c.l.b16 %v2308
        %v2348 = vunpack.c.l.b16 %v2309
        %v2349 = vpack.c.b16 %v2334, %v2333
        %v2350 = vpack.c.b16 %v2336, %v2335
        %v2351 = vpack.c.b16 %v2338, %v2337
        %v2352 = vpack.c.b16 %v2340, %v2339
        %v2353 = vpack.c.b16 %v2342, %v2341
        %v2354 = vpack.c.b16 %v2344, %v2343
        %v2355 = vpack.c.b16 %v2346, %v2345
        %v2356 = vpack.c.b16 %v2348, %v2347
        %2365 = vmatprep.subr.bf16.mxu0 0
        %2366 = vmatpush1.bf16.msra.mxu0 %v2349
        %2367 = vmatprep.subr.bf16.mxu0 0
        %2368 = vmatpush1.bf16.msra.mxu0 %v2350
        %2369 = vmatprep.subr.bf16.mxu0 0
        %2370 = vmatpush1.bf16.msra.mxu0 %v2351
        %2371 = vmatprep.subr.bf16.mxu0 0
        %2372 = vmatpush1.bf16.msra.mxu0 %v2352
        %2373 = vmatprep.subr.bf16.mxu0 0
        %2374 = vmatpush1.bf16.msra.mxu0 %v2353
        %2375 = vmatprep.subr.bf16.mxu0 0
        %2376 = vmatpush1.bf16.msra.mxu0 %v2354
        %2377 = vmatprep.subr.bf16.mxu0 0
        %2378 = vmatpush1.bf16.msra.mxu0 %v2355
        %2379 = vmatprep.subr.bf16.mxu0 0
        %2380 = vmatpush1.bf16.msra.mxu0 %v2356
        %2381 = vmatprep.subr.bf16.mxu0 0
        %2382 = vmatpush1.bf16.msra.mxu0 0
        %2383 = vmatprep.subr.bf16.mxu0 0
        %2384 = vmatpush1.bf16.msra.mxu0 0
        %2385 = vmatprep.subr.bf16.mxu0 0
        %2386 = vmatpush1.bf16.msra.mxu0 0
        %2387 = vmatprep.subr.bf16.mxu0 0
        %2388 = vmatpush1.bf16.msra.mxu0 0
        %2389 = vmatprep.subr.bf16.mxu0 0
        %2390 = vmatpush1.bf16.msra.mxu0 0
        %2391 = vmatprep.subr.bf16.mxu0 0
        %2392 = vmatpush1.bf16.msra.mxu0 0
        %2393 = vmatprep.subr.bf16.mxu0 0
        %2394 = vmatpush1.bf16.msra.mxu0 0
        %2395 = vmatprep.subr.bf16.mxu0 0
        %2396 = vmatpush1.bf16.msra.mxu0 0
        %2397 = vmatprep.mubr.bf16.mxu0 0
        %2398 = vmatmul.mubr.bf16.gmra.mrb[0].mxu0 %v2293
        %v2399 = vpop.f32.mrb[0].mxu0
        %v2400 = vadd.f32 %v2315, %v2399
        %v2401 = vpop.f32.mrb[0].mxu0
        %v2402 = vpop.f32.mrb[0].mxu0
        %v2403 = vadd.f32 %v2315, %v2402
        %v2404 = vpop.f32.mrb[0].mxu0
        %2405 = vdwg.mxu0
        %v2406 = vpack.c.bf16 %v2403, %v2400
        %v2408 = vunpack.c.l.b16 %v2406
        %v2409 = vunpack.c.h.b16 %v2406
        %v2410 = vpack.c.b16 %v2408, %v2408
        %v2411 = vpack.c.b16 %v2409, %v2409
        %2414 = vst [vmem:[%s341] sm:$0xf] %v2410
        %2415 = vst [vmem:[%s341 + $0x4] sm:$0xf] %v2411
        %s2416 = sand.u32 %s186, 1
        %s2417 = scalar_lea.sflag [#allocation4], %s2416
        %s2418 = sand.u32 %s186, 1
        %s2419 = smul.addr %s2418, 8
        %s2420 = scalar_lea.vmem [#allocation10], %s2419
        // Predicated region
        $region65: #{tpu_custom_call.1} parent=47 // pred_check
          %p2421 = pneg %p196
        $region66: #{tpu_custom_call.1} parent=47 // pred_check_branch
          %2423 = sbr.rel (%p2421) target = $region68
        $region67: #{tpu_custom_call.1} parent=47 // pred_region
          %s2424 = smul.u32 2, %s26
          %s2426 = ssub.s32 128, 128
          %2427 = vsyncadd %s2417, %s2426
          %s2428 = smul.addr %s2424, 64
          %s2429 = scalar_lea.hbm %s7, %s2428
          %s2430 = sshll.u32 %s2420, 4
          %s2431 = int_to_ptr.vmem [resolvable:$true] %s2430
          %2436 = dma.vmem_to_hbm [thread:$0]  %s2431, 128, %s2429, %s2417, 64, 64, 4
        $region68: #{tpu_custom_call.1} parent=47 // pred_fallthru
          _
      $region48: #{tpu_custom_call.1} parent=5 // pred_fallthru
        _
      %p2437 = scmp.le.s32.totalorder 2, %s21
      // Predicated region
      $region69: #{tpu_custom_call.1} parent=5 // pred_check
        %p2438 = pneg %p2437
      $region70: #{tpu_custom_call.1} parent=5 // pred_check_branch
        %2440 = sbr.rel (%p2438) target = $region72
      $region71: #{tpu_custom_call.1} parent=5 // pred_region
        %s2441 = ssub.s32 %s21, 2
        // Predicated region
        $region73: #{tpu_custom_call.1} parent=71 // pred_check
          %p2442 = pneg %p202
        $region74: #{tpu_custom_call.1} parent=71 // pred_check_branch
          %2444 = sbr.rel (%p2442) target = $region76
        $region75: #{tpu_custom_call.1} parent=71 // pred_region
          %s2445 = sand.u32 %s187, 1
          %s2446 = scalar_lea.sflag [#allocation4], %s2445
          %s2447 = sand.u32 %s187, 1
          %s2448 = smul.addr %s2447, 8
          %s2449 = scalar_lea.vmem [#allocation10], %s2448
          %2450 = dma.done %s2446, 128
        $region76: #{tpu_custom_call.1} parent=71 // pred_fallthru
          _
      $region72: #{tpu_custom_call.1} parent=5 // pred_fallthru
        _
    $region6: #{tpu_custom_call.1} parent=1 // loop_footer
      %s25 = sadd.s32 1, %s21
    $region7: #{tpu_custom_call.1} parent=1 // loop_footer_branch
      %20 = sbr.rel target = $region3
    $region8: #{tpu_custom_call.1} parent=1 // loop_exit
      _
    %2451 = vsyncpa [#allocation3], 1
    %s2452 = scalar_lea.sflag [#allocation3], 1
    %2453 = vsyncpa %s2452, 1
    %2454 = vsyncpa [#allocation6], 1
    %2455 = vsyncpa [#allocation9], 1
    %2456 = vsyncpa [#allocation4], 1
    %s2457 = scalar_lea.sflag [#allocation4], 1
    %2458 = vsyncpa %s2457, 1

</llo_original>
